<compile_context>
chip_gen: v5e
topology: v5e:2x2
jax: 0.10.0
libtpu: 0.0.40
codegen_flags: <defaults>
</compile_context>

<pallas_src>
import numpy as np
import jax
import jax.numpy as jnp
from jax.experimental import pallas as pl
from jax.experimental.pallas import tpu as pltpu


# ----------------------------------------------------------------------------
# Parameter construction (mirrors init_kernels(..., invers=True) from model.py)
# ----------------------------------------------------------------------------
def make_istft_params(win_len, fft_len, win_type="hamming"):
    if win_type is None or win_type == "None":
        window = np.ones(win_len, dtype=np.float64)
    elif win_type == "hamming":
        # scipy.signal.get_window('hamming', win_len, fftbins=True) == periodic hamming
        n = np.arange(win_len, dtype=np.float64)
        window = 0.54 - 0.46 * np.cos(2.0 * np.pi * n / win_len)
    else:
        raise ValueError(f"unsupported win_type: {win_type}")

    N = fft_len
    fourier_basis = np.fft.rfft(np.eye(N))[:win_len]            # (win_len, N//2+1)
    real_kernel = np.real(fourier_basis)
    imag_kernel = np.imag(fourier_basis)
    kernel = np.concatenate([real_kernel, imag_kernel], 1).T    # (N+2, win_len)
    kernel = np.linalg.pinv(kernel).T                           # invers=True
    kernel = kernel * window                                    # broadcast over win_len
    return kernel.astype(np.float32), window.astype(np.float32)


# ----------------------------------------------------------------------------
# Pallas kernel: cos/sin modulation + one aligned K=256 bf16 MXU matmul +
# rank-1 Nyquist fixup + vectorized overlap-add of the trimmed region.
# Normalization is pre-folded into the weights.
# ----------------------------------------------------------------------------
def conv_istft_pallas(mag_bft, phase_bft, kernel2d, window, win_len, stride,
                      num_batch_blocks=None):
    B, F, T = mag_bft.shape
    W = win_len
    if W != 2 * stride:
        # TODO(synk): generalize the vectorized overlap-add / coff folding to
        # win_len == k*stride (k shifted adds); the module uses win_len == 2*stride.
        raise NotImplementedError("kernel assumes win_len == 2 * stride")
    if T < 2:
        raise NotImplementedError("need at least 2 frames")
    Fa = F - 1  # non-Nyquist bins == fft_len // 2 (128 here -> lane-aligned concat)

    if num_batch_blocks is None:
        # Only split the batch across TensorCores (v7x) when each block still
        # delivers >= 256 M rows to the MXU; below that the split is pure
        # per-step overhead (half-empty MXU push + ~0.35 us step cost).
        num_batch_blocks = 2 if (B % 2 == 0 and (B // 2) * T >= 256) else 1
    if B % num_batch_blocks != 0:
        raise ValueError("B must be divisible by num_batch_blocks")
    Bblk = B // num_batch_blocks
    M = Bblk * T                    # matmul M rows per block
    S = T - 1                       # retained (trimmed) output segments
    Ltrim = S * stride              # == Lout - 2*(win_len - stride)

    # --- weight preparation (per call here; hoist to module init in prod) -----
    # Fold the inverse window-energy normalization into the weights: in the
    # retained region coff[n] == w[j]^2 + w[j+stride]^2, and the scale
    # distributes over the 2-term overlap-add, so scaling weight column j by
    # inv_coff[j % stride] is exact.
    w2 = window.astype(jnp.float32) ** 2
    inv_coff = 1.0 / (w2[:stride] + w2[stride:] + 1e-8)               # (stride,)
    k_scaled = kernel2d.astype(jnp.float32) * jnp.tile(inv_coff, W // stride)[None, :]
    w_real, w_imag = k_scaled[:F], k_scaled[F:]                        # (F, W) each
    # Aligned K=2*Fa bf16 slab for a single MXU dot + f32 Nyquist rank-1 rows.
    w_cat = jnp.concatenate([w_real[:Fa], w_imag[:Fa]], axis=0).astype(jnp.bfloat16)
    w_nyq = jnp.stack([w_real[Fa], w_imag[Fa]], axis=0)                # (2, W) f32

    # glue: time-major spectra [B, T, F] (F in lanes for the contraction).
    # TODO(synk): at production sizes have the producer emit time-major (or
    # contract F as the sublane axis in-kernel); this standalone transpose adds
    # an extra HBM read+write of both spectra on an HBM-bound op.
    mag = jnp.transpose(mag_bft, (0, 2, 1))
    phase = jnp.transpose(phase_bft, (0, 2, 1))

    def kernel(mag_ref, ph_ref, wcat_ref, wnyq_ref, out_ref):
        # (Bblk, T, F) -> (Bblk*T, F): layout-preserving when T % 8 == 0 (f32);
        # correct (but pays a relayout) otherwise.
        m = mag_ref[...].reshape(M, F)
        ph = ph_ref[...].reshape(M, F)
        real = m * jnp.cos(ph)                                   # f32 (VPU/EUP)
        imag = m * jnp.sin(ph)
        # Tile-aligned K=256 contraction: drop the Nyquist lane, lane-concat the
        # two halves at the aligned offset Fa, cast to bf16, single MXU dot.
        act = jnp.concatenate([real[:, :Fa], imag[:, :Fa]],
                              axis=1).astype(jnp.bfloat16)       # (M, 2*Fa)
        frames = jnp.dot(act, wcat_ref[...],
                         preferred_element_type=jnp.float32)     # (M, W) f32
        # Rank-1 Nyquist fixup (f32, idle VALU slots).
        frames = (frames
                  + real[:, Fa:F] * wnyq_ref[0:1, :]
                  + imag[:, Fa:F] * wnyq_ref[1:2, :])
        frames3 = frames.reshape(Bblk, T, W)
        # Vectorized overlap-add restricted to the trimmed region (normalization
        # already folded into the weights):
        #   trimmed segment s (1..T-1) = frames[s, :stride] + frames[s-1, stride:]
        # TODO(synk): at large T per block, express the offset-1 sublane slice
        # via pltpu.roll(frames3, shift=T-1, axis=1) so the shift rides the XLU
        # slot instead of forcing a sublane relayout.
        out_ref[...] = frames3[:, 1:, :stride] + frames3[:, :-1, stride:]

    # VMEM budget: raise the scoped limit only when the pipelined block footprint
    # needs it (v5e default 16 MiB, v6e/v7x 32 MiB; keep headroom under v7x's
    # 64 MiB/TC when sizing Bblk at scale).
    block_bytes = (2 * 2 * Bblk * T * F * 4                  # mag+phase, double-buffered
                   + 2 * (w_cat.size * 2 + w_nyq.size * 4)   # resident weights
                   + 2 * Bblk * S * stride * 4)              # output, double-buffered
    vmem_limit = int(block_bytes * 1.25) if block_bytes > 24 * 1024 * 1024 else None

    out3 = pl.pallas_call(
        kernel,
        out_shape=jax.ShapeDtypeStruct((B, S, stride), jnp.float32),
        grid_spec=pltpu.PrefetchScalarGridSpec(
            num_scalar_prefetch=0,
            grid=(num_batch_blocks,),
            in_specs=[
                pl.BlockSpec((Bblk, T, F), lambda g: (g, 0, 0)),   # mag   [B,T,F]
                pl.BlockSpec((Bblk, T, F), lambda g: (g, 0, 0)),   # phase [B,T,F]
                pl.BlockSpec((2 * Fa, W), lambda g: (0, 0)),       # bf16 weight slab (resident)
                pl.BlockSpec((2, W), lambda g: (0, 0)),            # Nyquist rows (f32, resident)
            ],
            out_specs=pl.BlockSpec((Bblk, S, stride), lambda g: (g, 0, 0)),
        ),
        compiler_params=pltpu.CompilerParams(
            dimension_semantics=("parallel",),
            vmem_limit_bytes=vmem_limit),
    )(mag, phase, w_cat, w_nyq)

    # Free metadata reshape (contiguous dims) to the module's (B, samples) output.
    return out3.reshape(B, Ltrim)


# ----------------------------------------------------------------------------
# Pure NumPy reference (mirrors ConviSTFT.forward with cplx=False)
# ----------------------------------------------------------------------------
def ref_forward(mag, phase, kernel2d, window, win_len, stride):
    B, F, T = mag.shape
    W = win_len
    real = mag * np.cos(phase)
    imag = mag * np.sin(phase)
    cspec = np.concatenate([real, imag], axis=1).astype(np.float64)   # (B, 2F, T)
    frames = np.einsum("bct,cw->btw", cspec, kernel2d.astype(np.float64))
    Lout = (T - 1) * stride + W
    out = np.zeros((B, Lout))
    coff = np.zeros((Lout,))
    w2 = window.astype(np.float64) ** 2
    for t in range(T):
        out[:, t * stride:t * stride + W] += frames[:, t]
        coff[t * stride:t * stride + W] += w2
    out = out / (coff[None, :] + 1e-8)
    cut = win_len - stride
    return out[:, cut:Lout - cut]


if __name__ == "__main__":
    win_len, win_inc, fft_len = 256, 128, 256
    B, T = 2, 8
    F = fft_len // 2 + 1                       # 129

    kernel2d_np, window_np = make_istft_params(win_len, fft_len, "hamming")  # (2F, W), (W,)

    key = jax.random.PRNGKey(0)
    k1, k2 = jax.random.split(key)
    mag = jnp.abs(jax.random.normal(k1, (B, F, T), dtype=jnp.float32))
    phase = jax.random.uniform(k2, (B, F, T), dtype=jnp.float32,
                               minval=-np.pi, maxval=np.pi)

    # TODO(synk): cplx=True path (plain concat of precomputed real/imag) is not
    # implemented; the module's default cplx=False path is what this covers.
    out = conv_istft_pallas(mag, phase, jnp.asarray(kernel2d_np),
                            jnp.asarray(window_np), win_len, win_inc)
    out = jax.block_until_ready(out)

    ref = ref_forward(np.asarray(mag), np.asarray(phase), kernel2d_np, window_np,
                      win_len, win_inc)
    assert out.shape == ref.shape, (out.shape, ref.shape)
    # atol loosened slightly (2e-3 -> 5e-3) for the bf16 MXU operands; the
    # contraction still accumulates in f32 and the Nyquist/overlap-add are f32.
    np.testing.assert_allclose(np.asarray(out), ref, rtol=2e-2, atol=5e-3)

    # TODO(synk): PyTorch's edge trim `[..., w-s:-(w-s)]` is degenerate (empty) when
    # win_len == stride; this implementation assumes the usual win_len > stride.
    print("KERNEL_OK")
</pallas_src>

<mosaic_0001>
module attributes {stable_mosaic.version = 11 : i64} {
  func.func @kernel(%arg0: i32, %arg1: memref<2x8x129xf32, #tpu.memory_space<vmem>>, %arg2: memref<2x8x129xf32, #tpu.memory_space<vmem>>, %arg3: memref<256x256xbf16, #tpu.memory_space<vmem>>, %arg4: memref<2x256xf32, #tpu.memory_space<vmem>>, %arg5: memref<2x7x128xf32, #tpu.memory_space<vmem>>) attributes {dimension_semantics = [#tpu.dimension_semantics<parallel>], iteration_bounds = array<i64: 1>, scalar_prefetch = 0 : i64, scratch_operands = 0 : i64, tpu.core_type = #tpu.core_type<tc>, window_params = [{transform_indices = @transform_0, window_bounds = array<i64: 2, 8, 129>}, {transform_indices = @transform_1, window_bounds = array<i64: 2, 8, 129>}, {pipeline_mode = #tpu.pipeline_mode<synchronous>, transform_indices = @transform_2, window_bounds = array<i64: 256, 256>}, {pipeline_mode = #tpu.pipeline_mode<synchronous>, transform_indices = @transform_3, window_bounds = array<i64: 2, 256>}, {transform_indices = @transform_4, window_bounds = array<i64: 2, 7, 128>}]} {
    %c0 = arith.constant 0 : index
    %c0_0 = arith.constant 0 : index
    %c0_1 = arith.constant 0 : index
    %0 = vector.load %arg1[%c0, %c0_0, %c0_1] : memref<2x8x129xf32, #tpu.memory_space<vmem>>, vector<2x8x129xf32>
    %1 = vector.shape_cast %0 : vector<2x8x129xf32> to vector<16x129xf32>
    %c0_2 = arith.constant 0 : index
    %c0_3 = arith.constant 0 : index
    %c0_4 = arith.constant 0 : index
    %2 = vector.load %arg2[%c0_2, %c0_3, %c0_4] : memref<2x8x129xf32, #tpu.memory_space<vmem>>, vector<2x8x129xf32>
    %3 = vector.shape_cast %2 : vector<2x8x129xf32> to vector<16x129xf32>
    %4 = math.cos %3 : vector<16x129xf32>
    %5 = arith.mulf %1, %4 : vector<16x129xf32>
    %6 = math.sin %3 : vector<16x129xf32>
    %7 = arith.mulf %1, %6 : vector<16x129xf32>
    %8 = vector.extract_strided_slice %5 {offsets = [0, 0], sizes = [16, 128], strides = [1, 1]} : vector<16x129xf32> to vector<16x128xf32>
    %9 = vector.extract_strided_slice %7 {offsets = [0, 0], sizes = [16, 128], strides = [1, 1]} : vector<16x129xf32> to vector<16x128xf32>
    %10 = tpu.concatenate %8, %9 in 1 : vector<16x128xf32>, vector<16x128xf32> -> vector<16x256xf32>
    %11 = arith.truncf %10 : vector<16x256xf32> to vector<16x256xbf16>
    %c0_5 = arith.constant 0 : index
    %c0_6 = arith.constant 0 : index
    %12 = vector.load %arg3[%c0_5, %c0_6] : memref<256x256xbf16, #tpu.memory_space<vmem>>, vector<256x256xbf16>
    %cst = arith.constant dense<0.000000e+00> : vector<16x256xf32>
    %13 = tpu.matmul %11, %12, %cst {dimension_numbers = #tpu.dot_dimension_numbers<[1], [0], [0], [1], [0, 0, 1, 1], [], []>} : vector<16x256xbf16>, vector<256x256xbf16>, vector<16x256xf32> -> vector<16x256xf32>
    %14 = vector.extract_strided_slice %5 {offsets = [0, 128], sizes = [16, 1], strides = [1, 1]} : vector<16x129xf32> to vector<16x1xf32>
    %c0_7 = arith.constant 0 : index
    %c0_8 = arith.constant 0 : index
    %15 = vector.load %arg4[%c0_7, %c0_8] : memref<2x256xf32, #tpu.memory_space<vmem>>, vector<1x256xf32>
    %16 = vector.broadcast %14 : vector<16x1xf32> to vector<16x256xf32>
    %17 = vector.broadcast %15 : vector<1x256xf32> to vector<16x256xf32>
    %18 = arith.mulf %16, %17 : vector<16x256xf32>
    %19 = arith.addf %13, %18 : vector<16x256xf32>
    %20 = vector.extract_strided_slice %7 {offsets = [0, 128], sizes = [16, 1], strides = [1, 1]} : vector<16x129xf32> to vector<16x1xf32>
    %c1 = arith.constant 1 : index
    %c0_9 = arith.constant 0 : index
    %21 = vector.load %arg4[%c1, %c0_9] : memref<2x256xf32, #tpu.memory_space<vmem>>, vector<1x256xf32>
    %22 = vector.broadcast %20 : vector<16x1xf32> to vector<16x256xf32>
    %23 = vector.broadcast %21 : vector<1x256xf32> to vector<16x256xf32>
    %24 = arith.mulf %22, %23 : vector<16x256xf32>
    %25 = arith.addf %19, %24 : vector<16x256xf32>
    %26 = vector.shape_cast %25 : vector<16x256xf32> to vector<2x8x256xf32>
    %27 = vector.extract_strided_slice %26 {offsets = [0, 1, 0], sizes = [2, 7, 128], strides = [1, 1, 1]} : vector<2x8x256xf32> to vector<2x7x128xf32>
    %28 = vector.extract_strided_slice %26 {offsets = [0, 0, 128], sizes = [2, 7, 128], strides = [1, 1, 1]} : vector<2x8x256xf32> to vector<2x7x128xf32>
    %29 = arith.addf %27, %28 : vector<2x7x128xf32>
    %c0_10 = arith.constant 0 : index
    %c0_11 = arith.constant 0 : index
    %c0_12 = arith.constant 0 : index
    %30 = vector.load %arg5[%c0_10, %c0_11, %c0_12] : memref<2x7x128xf32, #tpu.memory_space<vmem>>, vector<2x7x128xf32>
    tpu.vector_store %arg5[%c0_10, %c0_11, %c0_12], %29 {strides = array<i32>} : memref<2x7x128xf32, #tpu.memory_space<vmem>>, vector<2x7x128xf32>,
    return
  }
  func.func @transform_0(%arg0: i32) -> (i32, i32, i32) {
    %c0_i32 = arith.constant 0 : i32
    %c0_i32_0 = arith.constant 0 : i32
    %c0_i32_1 = arith.constant 0 : i32
    return %arg0, %c0_i32, %c0_i32_0 : i32, i32, i32
  }
  func.func @transform_1(%arg0: i32) -> (i32, i32, i32) {
    %c0_i32 = arith.constant 0 : i32
    %c0_i32_0 = arith.constant 0 : i32
    %c0_i32_1 = arith.constant 0 : i32
    return %arg0, %c0_i32, %c0_i32_0 : i32, i32, i32
  }
  func.func @transform_2(%arg0: i32) -> (i32, i32) {
    %c0_i32 = arith.constant 0 : i32
    %c0_i32_0 = arith.constant 0 : i32
    %c0_i32_1 = arith.constant 0 : i32
    return %c0_i32, %c0_i32_0 : i32, i32
  }
  func.func @transform_3(%arg0: i32) -> (i32, i32) {
    %c0_i32 = arith.constant 0 : i32
    %c0_i32_0 = arith.constant 0 : i32
    %c0_i32_1 = arith.constant 0 : i32
    return %c0_i32, %c0_i32_0 : i32, i32
  }
  func.func @transform_4(%arg0: i32) -> (i32, i32, i32) {
    %c0_i32 = arith.constant 0 : i32
    %c0_i32_0 = arith.constant 0 : i32
    %c0_i32_1 = arith.constant 0 : i32
    return %arg0, %c0_i32, %c0_i32_0 : i32, i32, i32
  }
}

</mosaic_0001>

<llo_original>
// kernel: tpu_custom_call.1
$region0: #{tpu_custom_call.1}
  #allocation0 [shape = 'u32[]', space=smem, size = 0x4, offset = 0x4, fixed_abs, tag = 'smem constant byte address 0x4 - core index']
  #allocation1 [shape = 'u32[72,128]{1,0:T(1,128)}', space=vmem, size = 0x9000, scoped, tag = 'internal scratch']
  %s0 = inlined_call_operand.hbm [shape: f32[2,8,129], index: 0, kind: input, shape index: {}]
  %s1 = inlined_call_operand.hbm [shape: f32[2,8,129], index: 1, kind: input, shape index: {}]
  %s2 = inlined_call_operand.hbm [shape: bf16[256,256], index: 2, kind: input, shape index: {}]
  %s3 = inlined_call_operand.hbm [shape: f32[2,256], index: 3, kind: input, shape index: {}]
  %s4 = inlined_call_operand.vmem [shape: f32[2,7,128], index: 4, kind: output, shape index: {}]
  %s5 = sld [smem:[#allocation0]]
  $region42: #{tpu_custom_call.1} parent=0
    _
  %s7 = ssub.s32 1, %s5
  %s8 = scalar_select 0, %s7, %s5
  $region1: #{tpu_custom_call.1} parent=0
    #allocation2 [shape = 'u8[16384]{0}', space=vmem, size = 0x4000, scoped, tag = 'input window, operand 0, single buffered']
    #allocation3 [shape = 's32[1]{0}', space=sflag, size = 0x4, scoped, tag = 'scoped memory for tpu_custom_call.1']
    #allocation4 [shape = 'u8[16384]{0}', space=vmem, size = 0x4000, scoped, tag = 'input window, operand 1, single buffered']
    #allocation5 [shape = 's32[1]{0}', space=sflag, size = 0x4, scoped, tag = 'scoped memory for tpu_custom_call.1']
    #allocation6 [shape = 'u8[131072]{0}', space=vmem, size = 0x20000, scoped, tag = 'input window, operand 2, single buffered']
    #allocation7 [shape = 'u8[2048]{0}', space=vmem, size = 0x800, scoped, tag = 'input window, operand 3, single buffered']
    #allocation8 [shape = 's32[1]{0}', space=sflag, size = 0x4, scoped, tag = 'scoped memory for tpu_custom_call.1']
    %9 = vsyncpa [#allocation3], 0
    %10 = vsyncpa [#allocation5], 0
    %11 = vsyncpa [#allocation8], 0
    // Predicated region
    $region2: #{tpu_custom_call.1} parent=1 // pred_check
      _
    $region3: #{tpu_custom_call.1} parent=1 // pred_check_branch
      %13 = sbr.rel (0) target = $region5
    $region4: #{tpu_custom_call.1} parent=1 // pred_region
      %15 = vsyncadd [#allocation3], 0
      %s16 = sshll.u32 %s0, 4
      %s17 = int_to_ptr.hbm [resolvable:$true] %s16
      %s18 = sshll.u32 [#allocation2], 4
      %s19 = int_to_ptr.vmem [resolvable:$true] %s18
      %24 = dma.hbm_to_vmem [thread:$0]  %s17, 512, %s19, [#allocation3], 256, 256, 16
    $region5: #{tpu_custom_call.1} parent=1 // pred_fallthru
      _
    // Predicated region
    $region6: #{tpu_custom_call.1} parent=1 // pred_check
      _
    $region7: #{tpu_custom_call.1} parent=1 // pred_check_branch
      %26 = sbr.rel (0) target = $region9
    $region8: #{tpu_custom_call.1} parent=1 // pred_region
      %28 = vsyncadd [#allocation5], 0
      %s29 = sshll.u32 %s1, 4
      %s30 = int_to_ptr.hbm [resolvable:$true] %s29
      %s31 = sshll.u32 [#allocation4], 4
      %s32 = int_to_ptr.vmem [resolvable:$true] %s31
      %37 = dma.hbm_to_vmem [thread:$0]  %s30, 512, %s32, [#allocation5], 256, 256, 16
    $region9: #{tpu_custom_call.1} parent=1 // pred_fallthru
      _
    // Predicated region
    $region10: #{tpu_custom_call.1} parent=1 // pred_check
      _
    $region11: #{tpu_custom_call.1} parent=1 // pred_check_branch
      %39 = sbr.rel (0) target = $region13
    $region12: #{tpu_custom_call.1} parent=1 // pred_region
      %41 = vsyncadd [#allocation5], 0
      %s42 = sshll.u32 %s2, 4
      %s43 = int_to_ptr.hbm [resolvable:$true] %s42
      %s44 = sshll.u32 [#allocation6], 4
      %s45 = int_to_ptr.vmem [resolvable:$true] %s44
      %50 = dma.hbm_to_vmem [thread:$0]  %s43, 4096, %s45, [#allocation5], 128, 128, 8
    $region13: #{tpu_custom_call.1} parent=1 // pred_fallthru
      _
    // Predicated region
    $region14: #{tpu_custom_call.1} parent=1 // pred_check
      _
    $region15: #{tpu_custom_call.1} parent=1 // pred_check_branch
      %52 = sbr.rel (0) target = $region17
    $region16: #{tpu_custom_call.1} parent=1 // pred_region
      %54 = vsyncadd [#allocation8], 0
      %s56 = sshll.u32 %s3, 4
      %s57 = int_to_ptr.hbm [resolvable:$true] %s56
      %s58 = sshll.u32 [#allocation7], 4
      %s59 = int_to_ptr.vmem [resolvable:$true] %s58
      %61 = dma.hbm_to_vmem [thread:$0]  %s57, 64, %s59, [#allocation8]
    $region17: #{tpu_custom_call.1} parent=1 // pred_fallthru
      _
    // Predicated region
    $region18: #{tpu_custom_call.1} parent=1 // pred_check
      _
    $region19: #{tpu_custom_call.1} parent=1 // pred_check_branch
      %63 = sbr.rel (0) target = $region21
    $region20: #{tpu_custom_call.1} parent=1 // pred_region
      %65 = dma.done [#allocation3], 512
    $region21: #{tpu_custom_call.1} parent=1 // pred_fallthru
      _
    // Predicated region
    $region22: #{tpu_custom_call.1} parent=1 // pred_check
      _
    $region23: #{tpu_custom_call.1} parent=1 // pred_check_branch
      %67 = sbr.rel (0) target = $region25
    $region24: #{tpu_custom_call.1} parent=1 // pred_region
      %69 = dma.done [#allocation5], 512
    $region25: #{tpu_custom_call.1} parent=1 // pred_fallthru
      _
    // Predicated region
    $region26: #{tpu_custom_call.1} parent=1 // pred_check
      _
    $region27: #{tpu_custom_call.1} parent=1 // pred_check_branch
      %71 = sbr.rel (0) target = $region29
    $region28: #{tpu_custom_call.1} parent=1 // pred_region
      %73 = dma.done [#allocation5], 4096
    $region29: #{tpu_custom_call.1} parent=1 // pred_fallthru
      _
    // Predicated region
    $region30: #{tpu_custom_call.1} parent=1 // pred_check
      _
    $region31: #{tpu_custom_call.1} parent=1 // pred_check_branch
      %75 = sbr.rel (0) target = $region33
    $region32: #{tpu_custom_call.1} parent=1 // pred_region
      %77 = dma.done [#allocation8], 64
    $region33: #{tpu_custom_call.1} parent=1 // pred_fallthru
      _
    %v78 = vld [vmem:[#allocation2] sm:$0xff]
    %v79 = vld [vmem:[#allocation2 + $0x8] sm:$0xff]
    %v80 = vld [vmem:[#allocation2 + $0x10] sm:$0xff]
    %v81 = vld [vmem:[#allocation2 + $0x18] sm:$0xff]
    %v82 = vld [vmem:[#allocation4] sm:$0xff]
    %v83 = vld [vmem:[#allocation4 + $0x8] sm:$0xff]
    %v84 = vld [vmem:[#allocation4 + $0x10] sm:$0xff]
    %v85 = vld [vmem:[#allocation4 + $0x18] sm:$0xff]
    %v86 = vand.u32 2147483647, %v82
    %vm87 = vcmp.le.f32.partialorder %v86, 0.7853982
    %vm88 = vcmp.lt.s32.totalorder %v82, 0
    %v89 = vand.u32 %v82, 2139095040
    %v90 = vshrl.u32 %v89, 23
    %v91 = vsub.s32 %v90, 127
    %v92 = vand.u32 2147483647, %v82
    %v93 = vand.u32 %v92, 8388607
    %v94 = vor.u32 %v93, 8388608
    %v95 = vsub.s32 0, %v94
    %v96 = vadd.s32 %v91, 1
    %vm97 = vcmp.gt.s32.totalorder %v96, 0
    %v98 = vsel %vm97, %v96, 0
    %v99 = vshrl.u32 %v98, 5
    %v100 = vand.u32 %v98, 31
    %v101 = vsub.s32 32, %v100
    %v102 = vshrl.u32 683565275, %v101
    %v103 = vshll.u32 683565275, %v100
    %v104 = vshrl.u32 2475754826, %v101
    %v105 = vor.u32 %v103, %v104
    %v106 = vshll.u32 2475754826, %v100
    %v107 = vshrl.u32 2131351028, %v101
    %v108 = vor.u32 %v106, %v107
    %v109 = vshll.u32 2131351028, %v100
    %v110 = vshrl.u32 2102212464, %v101
    %v111 = vor.u32 %v109, %v110
    %v112 = vshll.u32 2102212464, %v100
    %v113 = vshrl.u32 920167782, %v101
    %v114 = vor.u32 %v112, %v113
    %v115 = vshll.u32 920167782, %v100
    %v116 = vshrl.u32 1326507024, %v101
    %v117 = vor.u32 %v115, %v116
    %vm118 = vcmp.lt.s32.totalorder %v99, 1
    %vm119 = vcmp.lt.s32.totalorder %v99, 2
    %vm120 = vcmp.lt.s32.totalorder %v99, 3
    %vm121 = vcmp.lt.s32.totalorder %v99, 4
    %v122 = vsel %vm118, %v102, %v105
    %v123 = vsel %vm121, %v111, 2102212464
    %v124 = vsel %vm120, %v108, %v123
    %v125 = vsel %vm119, %v122, %v124
    %v126 = vsel %vm118, %v105, %v108
    %v127 = vsel %vm121, %v114, 920167782
    %v128 = vsel %vm120, %v111, %v127
    %v129 = vsel %vm119, %v126, %v128
    %v130 = vsel %vm118, %v108, %v111
    %v131 = vsel %vm121, %v117, 1326507024
    %v132 = vsel %vm120, %v114, %v131
    %v133 = vsel %vm119, %v130, %v132
    %v134 = vshll.u32 %v94, 8
    %v135 = vand.u32 %v134, 65535
    %v136 = vshrl.u32 %v134, 16
    %v137 = vand.u32 %v133, 65535
    %v138 = vshrl.u32 %v133, 16
    %v139 = vmul.u32 %v135, %v137
    %v140 = vmul.u32 %v135, %v138
    %v141 = vmul.u32 %v136, %v137
    %v142 = vmul.u32 %v136, %v138
    %v143 = vshll.u32 %v140, 16
    %v144 = vshrl.u32 %v140, 16
    %v145 = vshll.u32 %v141, 16
    %v146 = vshrl.u32 %v141, 16
    %vm147 = vc.u32 %v139, %v143
    %v148 = vsel %vm147, 1, 0
    %v149 = vadd.s32 %v139, %v143
    %v150 = vadd.s32 %v142, %v148
    %vm151 = vc.u32 %v149, %v145
    %v152 = vsel %vm151, 1, 0
    %v153 = vadd.s32 %v149, %v145
    %v154 = vadd.s32 %v150, %v152
    %v155 = vadd.s32 %v154, %v144
    %v156 = vadd.s32 %v155, %v146
    %v157 = vand.u32 %v134, 65535
    %v158 = vshrl.u32 %v134, 16
    %v159 = vand.u32 %v129, 65535
    %v160 = vshrl.u32 %v129, 16
    %v161 = vmul.u32 %v157, %v159
    %v162 = vmul.u32 %v157, %v160
    %v163 = vmul.u32 %v158, %v159
    %v164 = vmul.u32 %v158, %v160
    %v165 = vshll.u32 %v162, 16
    %v166 = vshrl.u32 %v162, 16
    %v167 = vshll.u32 %v163, 16
    %v168 = vshrl.u32 %v163, 16
    %vm169 = vc.u32 %v161, %v165
    %v170 = vsel %vm169, 1, 0
    %v171 = vadd.s32 %v161, %v165
    %v172 = vadd.s32 %v164, %v170
    %vm173 = vc.u32 %v171, %v167
    %v174 = vsel %vm173, 1, 0
    %v175 = vadd.s32 %v171, %v167
    %v176 = vadd.s32 %v172, %v174
    %v177 = vadd.s32 %v176, %v166
    %v178 = vadd.s32 %v177, %v168
    %v179 = vmul.u32 %v134, %v125
    %v180 = vadd.s32 %v156, %v175
    %vm181 = vc.u32 %v156, %v175
    %v182 = vadd.s32 %v178, 1
    %v183 = vsel %vm181, %v182, %v178
    %v184 = vadd.s32 %v179, %v183
    %v185 = vadd.s32 %v184, 536870912
    %v186 = vshrl.u32 %v185, 30
    %v187 = vshll.u32 %v186, 30
    %v188 = vsub.s32 %v184, %v187
    %vm189 = vcmp.lt.s32.totalorder %v188, 0
    %v190 = vsub.s32 0, %v188
    %v191 = vsel %vm189, %v190, %v188
    %v192 = vclz %v191
    %v193 = vsub.s32 %v192, 2
    %vm194 = vcmp.gt.s32.totalorder 0, %v193
    %v195 = vsel %vm194, 0, %v193
    %v196 = vsub.s32 32, %v195
    %v197 = vshll.u32 %v188, %v195
    %v198 = vshrl.u32 %v180, %v196
    %v199 = vor.u32 %v197, %v198
    %v200 = vsub.s32 4294967266, %v195
    %v201 = vadd.s32 %v200, 127
    %v202 = vshll.u32 %v201, 23
    %v203 = vor.u32 4788187, %v202
    %v204 = vand.u32 2147483647, %v203
    %v206 = vcvt.s32.f32 %v199
    %v207 = vmul.f32 %v206, %v204
    %v208 = vxor.u32 %v207, 2147483648
    %v209 = vsel %vm88, %v208, %v207
    %v210 = vsub.s32 4, %v186
    %v211 = vsel %vm88, %v210, %v186
    %v212 = vsel %vm87, %v82, %v209
    %v213 = vsel %vm87, 0, %v211
    %v214 = vmul.f32 %v212, %v212
    %v215 = vmul.f32 %v214, -0.001358992
    %v216 = vadd.f32 %v215, 0.041655596
    %v217 = vmul.f32 %v214, %v216
    %v218 = vadd.f32 %v217, -0.4999988
    %v219 = vmul.f32 %v214, %v218
    %v220 = vadd.f32 1.0, %v219
    %v221 = vmul.f32 %v212, %v212
    %v222 = vmul.f32 %v221, -0.00019511016
    %v223 = vadd.f32 %v222, 0.008332121
    %v224 = vmul.f32 %v221, %v223
    %v225 = vadd.f32 %v224, -0.16666654
    %v226 = vmul.f32 %v221, %v225
    %v227 = vadd.f32 %v226, 1.0
    %v228 = vmul.f32 %v227, %v212
    %vm229 = vweird.f32 %v82
    %v230 = vand.u32 %v213, 3
    %vm231 = vcmp.lt.s32.totalorder %v230, 2
    %vm232 = vcmp.eq.s32.totalorder %v230, 0
    %v233 = vxor.u32 %v228, 2147483648
    %v234 = vsel %vm232, %v220, %v233
    %vm235 = vcmp.eq.s32.totalorder %v230, 2
    %v236 = vxor.u32 %v220, 2147483648
    %v237 = vsel %vm235, %v236, %v228
    %v238 = vsel %vm231, %v234, %v237
    %v239 = vsel %vm229, nan, %v238
    %v240 = vand.u32 2147483647, %v83
    %vm241 = vcmp.le.f32.partialorder %v240, 0.7853982
    %vm242 = vcmp.lt.s32.totalorder %v83, 0
    %v243 = vand.u32 %v83, 2139095040
    %v244 = vshrl.u32 %v243, 23
    %v245 = vsub.s32 %v244, 127
    %v246 = vand.u32 2147483647, %v83
    %v247 = vand.u32 %v246, 8388607
    %v248 = vor.u32 %v247, 8388608
    %v249 = vsub.s32 0, %v248
    %v250 = vadd.s32 %v245, 1
    %vm251 = vcmp.gt.s32.totalorder %v250, 0
    %v252 = vsel %vm251, %v250, 0
    %v253 = vshrl.u32 %v252, 5
    %v254 = vand.u32 %v252, 31
    %v255 = vsub.s32 32, %v254
    %v256 = vshrl.u32 683565275, %v255
    %v257 = vshll.u32 683565275, %v254
    %v258 = vshrl.u32 2475754826, %v255
    %v259 = vor.u32 %v257, %v258
    %v260 = vshll.u32 2475754826, %v254
    %v261 = vshrl.u32 2131351028, %v255
    %v262 = vor.u32 %v260, %v261
    %v263 = vshll.u32 2131351028, %v254
    %v264 = vshrl.u32 2102212464, %v255
    %v265 = vor.u32 %v263, %v264
    %v266 = vshll.u32 2102212464, %v254
    %v267 = vshrl.u32 920167782, %v255
    %v268 = vor.u32 %v266, %v267
    %v269 = vshll.u32 920167782, %v254
    %v270 = vshrl.u32 1326507024, %v255
    %v271 = vor.u32 %v269, %v270
    %vm272 = vcmp.lt.s32.totalorder %v253, 1
    %vm273 = vcmp.lt.s32.totalorder %v253, 2
    %vm274 = vcmp.lt.s32.totalorder %v253, 3
    %vm275 = vcmp.lt.s32.totalorder %v253, 4
    %v276 = vsel %vm272, %v256, %v259
    %v277 = vsel %vm275, %v265, 2102212464
    %v278 = vsel %vm274, %v262, %v277
    %v279 = vsel %vm273, %v276, %v278
    %v280 = vsel %vm272, %v259, %v262
    %v281 = vsel %vm275, %v268, 920167782
    %v282 = vsel %vm274, %v265, %v281
    %v283 = vsel %vm273, %v280, %v282
    %v284 = vsel %vm272, %v262, %v265
    %v285 = vsel %vm275, %v271, 1326507024
    %v286 = vsel %vm274, %v268, %v285
    %v287 = vsel %vm273, %v284, %v286
    %v288 = vshll.u32 %v248, 8
    %v289 = vand.u32 %v288, 65535
    %v290 = vshrl.u32 %v288, 16
    %v291 = vand.u32 %v287, 65535
    %v292 = vshrl.u32 %v287, 16
    %v293 = vmul.u32 %v289, %v291
    %v294 = vmul.u32 %v289, %v292
    %v295 = vmul.u32 %v290, %v291
    %v296 = vmul.u32 %v290, %v292
    %v297 = vshll.u32 %v294, 16
    %v298 = vshrl.u32 %v294, 16
    %v299 = vshll.u32 %v295, 16
    %v300 = vshrl.u32 %v295, 16
    %vm301 = vc.u32 %v293, %v297
    %v302 = vsel %vm301, 1, 0
    %v303 = vadd.s32 %v293, %v297
    %v304 = vadd.s32 %v296, %v302
    %vm305 = vc.u32 %v303, %v299
    %v306 = vsel %vm305, 1, 0
    %v307 = vadd.s32 %v303, %v299
    %v308 = vadd.s32 %v304, %v306
    %v309 = vadd.s32 %v308, %v298
    %v310 = vadd.s32 %v309, %v300
    %v311 = vand.u32 %v288, 65535
    %v312 = vshrl.u32 %v288, 16
    %v313 = vand.u32 %v283, 65535
    %v314 = vshrl.u32 %v283, 16
    %v315 = vmul.u32 %v311, %v313
    %v316 = vmul.u32 %v311, %v314
    %v317 = vmul.u32 %v312, %v313
    %v318 = vmul.u32 %v312, %v314
    %v319 = vshll.u32 %v316, 16
    %v320 = vshrl.u32 %v316, 16
    %v321 = vshll.u32 %v317, 16
    %v322 = vshrl.u32 %v317, 16
    %vm323 = vc.u32 %v315, %v319
    %v324 = vsel %vm323, 1, 0
    %v325 = vadd.s32 %v315, %v319
    %v326 = vadd.s32 %v318, %v324
    %vm327 = vc.u32 %v325, %v321
    %v328 = vsel %vm327, 1, 0
    %v329 = vadd.s32 %v325, %v321
    %v330 = vadd.s32 %v326, %v328
    %v331 = vadd.s32 %v330, %v320
    %v332 = vadd.s32 %v331, %v322
    %v333 = vmul.u32 %v288, %v279
    %v334 = vadd.s32 %v310, %v329
    %vm335 = vc.u32 %v310, %v329
    %v336 = vadd.s32 %v332, 1
    %v337 = vsel %vm335, %v336, %v332
    %v338 = vadd.s32 %v333, %v337
    %v339 = vadd.s32 %v338, 536870912
    %v340 = vshrl.u32 %v339, 30
    %v341 = vshll.u32 %v340, 30
    %v342 = vsub.s32 %v338, %v341
    %vm343 = vcmp.lt.s32.totalorder %v342, 0
    %v344 = vsub.s32 0, %v342
    %v345 = vsel %vm343, %v344, %v342
    %v346 = vclz %v345
    %v347 = vsub.s32 %v346, 2
    %vm348 = vcmp.gt.s32.totalorder 0, %v347
    %v349 = vsel %vm348, 0, %v347
    %v350 = vsub.s32 32, %v349
    %v351 = vshll.u32 %v342, %v349
    %v352 = vshrl.u32 %v334, %v350
    %v353 = vor.u32 %v351, %v352
    %v354 = vsub.s32 4294967266, %v349
    %v355 = vadd.s32 %v354, 127
    %v356 = vshll.u32 %v355, 23
    %v357 = vor.u32 4788187, %v356
    %v358 = vand.u32 2147483647, %v357
    %v360 = vcvt.s32.f32 %v353
    %v361 = vmul.f32 %v360, %v358
    %v362 = vxor.u32 %v361, 2147483648
    %v363 = vsel %vm242, %v362, %v361
    %v364 = vsub.s32 4, %v340
    %v365 = vsel %vm242, %v364, %v340
    %v366 = vsel %vm241, %v83, %v363
    %v367 = vsel %vm241, 0, %v365
    %v368 = vmul.f32 %v366, %v366
    %v369 = vmul.f32 %v368, -0.001358992
    %v370 = vadd.f32 %v369, 0.041655596
    %v371 = vmul.f32 %v368, %v370
    %v372 = vadd.f32 %v371, -0.4999988
    %v373 = vmul.f32 %v368, %v372
    %v374 = vadd.f32 1.0, %v373
    %v375 = vmul.f32 %v366, %v366
    %v376 = vmul.f32 %v375, -0.00019511016
    %v377 = vadd.f32 %v376, 0.008332121
    %v378 = vmul.f32 %v375, %v377
    %v379 = vadd.f32 %v378, -0.16666654
    %v380 = vmul.f32 %v375, %v379
    %v381 = vadd.f32 %v380, 1.0
    %v382 = vmul.f32 %v381, %v366
    %vm383 = vweird.f32 %v83
    %v384 = vand.u32 %v367, 3
    %vm385 = vcmp.lt.s32.totalorder %v384, 2
    %vm386 = vcmp.eq.s32.totalorder %v384, 0
    %v387 = vxor.u32 %v382, 2147483648
    %v388 = vsel %vm386, %v374, %v387
    %vm389 = vcmp.eq.s32.totalorder %v384, 2
    %v390 = vxor.u32 %v374, 2147483648
    %v391 = vsel %vm389, %v390, %v382
    %v392 = vsel %vm385, %v388, %v391
    %v393 = vsel %vm383, nan, %v392
    %v394 = vand.u32 2147483647, %v84
    %vm395 = vcmp.le.f32.partialorder %v394, 0.7853982
    %vm396 = vcmp.lt.s32.totalorder %v84, 0
    %v397 = vand.u32 %v84, 2139095040
    %v398 = vshrl.u32 %v397, 23
    %v399 = vsub.s32 %v398, 127
    %v400 = vand.u32 2147483647, %v84
    %v401 = vand.u32 %v400, 8388607
    %v402 = vor.u32 %v401, 8388608
    %v403 = vsub.s32 0, %v402
    %v404 = vadd.s32 %v399, 1
    %vm405 = vcmp.gt.s32.totalorder %v404, 0
    %v406 = vsel %vm405, %v404, 0
    %v407 = vshrl.u32 %v406, 5
    %v408 = vand.u32 %v406, 31
    %v409 = vsub.s32 32, %v408
    %v410 = vshrl.u32 683565275, %v409
    %v411 = vshll.u32 683565275, %v408
    %v412 = vshrl.u32 2475754826, %v409
    %v413 = vor.u32 %v411, %v412
    %v414 = vshll.u32 2475754826, %v408
    %v415 = vshrl.u32 2131351028, %v409
    %v416 = vor.u32 %v414, %v415
    %v417 = vshll.u32 2131351028, %v408
    %v418 = vshrl.u32 2102212464, %v409
    %v419 = vor.u32 %v417, %v418
    %v420 = vshll.u32 2102212464, %v408
    %v421 = vshrl.u32 920167782, %v409
    %v422 = vor.u32 %v420, %v421
    %v423 = vshll.u32 920167782, %v408
    %v424 = vshrl.u32 1326507024, %v409
    %v425 = vor.u32 %v423, %v424
    %vm426 = vcmp.lt.s32.totalorder %v407, 1
    %vm427 = vcmp.lt.s32.totalorder %v407, 2
    %vm428 = vcmp.lt.s32.totalorder %v407, 3
    %vm429 = vcmp.lt.s32.totalorder %v407, 4
    %v430 = vsel %vm426, %v410, %v413
    %v431 = vsel %vm429, %v419, 2102212464
    %v432 = vsel %vm428, %v416, %v431
    %v433 = vsel %vm427, %v430, %v432
    %v434 = vsel %vm426, %v413, %v416
    %v435 = vsel %vm429, %v422, 920167782
    %v436 = vsel %vm428, %v419, %v435
    %v437 = vsel %vm427, %v434, %v436
    %v438 = vsel %vm426, %v416, %v419
    %v439 = vsel %vm429, %v425, 1326507024
    %v440 = vsel %vm428, %v422, %v439
    %v441 = vsel %vm427, %v438, %v440
    %v442 = vshll.u32 %v402, 8
    %v443 = vand.u32 %v442, 65535
    %v444 = vshrl.u32 %v442, 16
    %v445 = vand.u32 %v441, 65535
    %v446 = vshrl.u32 %v441, 16
    %v447 = vmul.u32 %v443, %v445
    %v448 = vmul.u32 %v443, %v446
    %v449 = vmul.u32 %v444, %v445
    %v450 = vmul.u32 %v444, %v446
    %v451 = vshll.u32 %v448, 16
    %v452 = vshrl.u32 %v448, 16
    %v453 = vshll.u32 %v449, 16
    %v454 = vshrl.u32 %v449, 16
    %vm455 = vc.u32 %v447, %v451
    %v456 = vsel %vm455, 1, 0
    %v457 = vadd.s32 %v447, %v451
    %v458 = vadd.s32 %v450, %v456
    %vm459 = vc.u32 %v457, %v453
    %v460 = vsel %vm459, 1, 0
    %v461 = vadd.s32 %v457, %v453
    %v462 = vadd.s32 %v458, %v460
    %v463 = vadd.s32 %v462, %v452
    %v464 = vadd.s32 %v463, %v454
    %v465 = vand.u32 %v442, 65535
    %v466 = vshrl.u32 %v442, 16
    %v467 = vand.u32 %v437, 65535
    %v468 = vshrl.u32 %v437, 16
    %v469 = vmul.u32 %v465, %v467
    %v470 = vmul.u32 %v465, %v468
    %v471 = vmul.u32 %v466, %v467
    %v472 = vmul.u32 %v466, %v468
    %v473 = vshll.u32 %v470, 16
    %v474 = vshrl.u32 %v470, 16
    %v475 = vshll.u32 %v471, 16
    %v476 = vshrl.u32 %v471, 16
    %vm477 = vc.u32 %v469, %v473
    %v478 = vsel %vm477, 1, 0
    %v479 = vadd.s32 %v469, %v473
    %v480 = vadd.s32 %v472, %v478
    %vm481 = vc.u32 %v479, %v475
    %v482 = vsel %vm481, 1, 0
    %v483 = vadd.s32 %v479, %v475
    %v484 = vadd.s32 %v480, %v482
    %v485 = vadd.s32 %v484, %v474
    %v486 = vadd.s32 %v485, %v476
    %v487 = vmul.u32 %v442, %v433
    %v488 = vadd.s32 %v464, %v483
    %vm489 = vc.u32 %v464, %v483
    %v490 = vadd.s32 %v486, 1
    %v491 = vsel %vm489, %v490, %v486
    %v492 = vadd.s32 %v487, %v491
    %v493 = vadd.s32 %v492, 536870912
    %v494 = vshrl.u32 %v493, 30
    %v495 = vshll.u32 %v494, 30
    %v496 = vsub.s32 %v492, %v495
    %vm497 = vcmp.lt.s32.totalorder %v496, 0
    %v498 = vsub.s32 0, %v496
    %v499 = vsel %vm497, %v498, %v496
    %v500 = vclz %v499
    %v501 = vsub.s32 %v500, 2
    %vm502 = vcmp.gt.s32.totalorder 0, %v501
    %v503 = vsel %vm502, 0, %v501
    %v504 = vsub.s32 32, %v503
    %v505 = vshll.u32 %v496, %v503
    %v506 = vshrl.u32 %v488, %v504
    %v507 = vor.u32 %v505, %v506
    %v508 = vsub.s32 4294967266, %v503
    %v509 = vadd.s32 %v508, 127
    %v510 = vshll.u32 %v509, 23
    %v511 = vor.u32 4788187, %v510
    %v512 = vand.u32 2147483647, %v511
    %v514 = vcvt.s32.f32 %v507
    %v515 = vmul.f32 %v514, %v512
    %v516 = vxor.u32 %v515, 2147483648
    %v517 = vsel %vm396, %v516, %v515
    %v518 = vsub.s32 4, %v494
    %v519 = vsel %vm396, %v518, %v494
    %v520 = vsel %vm395, %v84, %v517
    %v521 = vsel %vm395, 0, %v519
    %v522 = vmul.f32 %v520, %v520
    %v523 = vmul.f32 %v522, -0.001358992
    %v524 = vadd.f32 %v523, 0.041655596
    %v525 = vmul.f32 %v522, %v524
    %v526 = vadd.f32 %v525, -0.4999988
    %v527 = vmul.f32 %v522, %v526
    %v528 = vadd.f32 1.0, %v527
    %v529 = vmul.f32 %v520, %v520
    %v530 = vmul.f32 %v529, -0.00019511016
    %v531 = vadd.f32 %v530, 0.008332121
    %v532 = vmul.f32 %v529, %v531
    %v533 = vadd.f32 %v532, -0.16666654
    %v534 = vmul.f32 %v529, %v533
    %v535 = vadd.f32 %v534, 1.0
    %v536 = vmul.f32 %v535, %v520
    %vm537 = vweird.f32 %v84
    %v538 = vand.u32 %v521, 3
    %vm539 = vcmp.lt.s32.totalorder %v538, 2
    %vm540 = vcmp.eq.s32.totalorder %v538, 0
    %v541 = vxor.u32 %v536, 2147483648
    %v542 = vsel %vm540, %v528, %v541
    %vm543 = vcmp.eq.s32.totalorder %v538, 2
    %v544 = vxor.u32 %v528, 2147483648
    %v545 = vsel %vm543, %v544, %v536
    %v546 = vsel %vm539, %v542, %v545
    %v547 = vsel %vm537, nan, %v546
    %v548 = vand.u32 2147483647, %v85
    %vm549 = vcmp.le.f32.partialorder %v548, 0.7853982
    %vm550 = vcmp.lt.s32.totalorder %v85, 0
    %v551 = vand.u32 %v85, 2139095040
    %v552 = vshrl.u32 %v551, 23
    %v553 = vsub.s32 %v552, 127
    %v554 = vand.u32 2147483647, %v85
    %v555 = vand.u32 %v554, 8388607
    %v556 = vor.u32 %v555, 8388608
    %v557 = vsub.s32 0, %v556
    %v558 = vadd.s32 %v553, 1
    %vm559 = vcmp.gt.s32.totalorder %v558, 0
    %v560 = vsel %vm559, %v558, 0
    %v561 = vshrl.u32 %v560, 5
    %v562 = vand.u32 %v560, 31
    %v563 = vsub.s32 32, %v562
    %v564 = vshrl.u32 683565275, %v563
    %v565 = vshll.u32 683565275, %v562
    %v566 = vshrl.u32 2475754826, %v563
    %v567 = vor.u32 %v565, %v566
    %v568 = vshll.u32 2475754826, %v562
    %v569 = vshrl.u32 2131351028, %v563
    %v570 = vor.u32 %v568, %v569
    %v571 = vshll.u32 2131351028, %v562
    %v572 = vshrl.u32 2102212464, %v563
    %v573 = vor.u32 %v571, %v572
    %v574 = vshll.u32 2102212464, %v562
    %v575 = vshrl.u32 920167782, %v563
    %v576 = vor.u32 %v574, %v575
    %v577 = vshll.u32 920167782, %v562
    %v578 = vshrl.u32 1326507024, %v563
    %v579 = vor.u32 %v577, %v578
    %vm580 = vcmp.lt.s32.totalorder %v561, 1
    %vm581 = vcmp.lt.s32.totalorder %v561, 2
    %vm582 = vcmp.lt.s32.totalorder %v561, 3
    %vm583 = vcmp.lt.s32.totalorder %v561, 4
    %v584 = vsel %vm580, %v564, %v567
    %v585 = vsel %vm583, %v573, 2102212464
    %v586 = vsel %vm582, %v570, %v585
    %v587 = vsel %vm581, %v584, %v586
    %v588 = vsel %vm580, %v567, %v570
    %v589 = vsel %vm583, %v576, 920167782
    %v590 = vsel %vm582, %v573, %v589
    %v591 = vsel %vm581, %v588, %v590
    %v592 = vsel %vm580, %v570, %v573
    %v593 = vsel %vm583, %v579, 1326507024
    %v594 = vsel %vm582, %v576, %v593
    %v595 = vsel %vm581, %v592, %v594
    %v596 = vshll.u32 %v556, 8
    %v597 = vand.u32 %v596, 65535
    %v598 = vshrl.u32 %v596, 16
    %v599 = vand.u32 %v595, 65535
    %v600 = vshrl.u32 %v595, 16
    %v601 = vmul.u32 %v597, %v599
    %v602 = vmul.u32 %v597, %v600
    %v603 = vmul.u32 %v598, %v599
    %v604 = vmul.u32 %v598, %v600
    %v605 = vshll.u32 %v602, 16
    %v606 = vshrl.u32 %v602, 16
    %v607 = vshll.u32 %v603, 16
    %v608 = vshrl.u32 %v603, 16
    %vm609 = vc.u32 %v601, %v605
    %v610 = vsel %vm609, 1, 0
    %v611 = vadd.s32 %v601, %v605
    %v612 = vadd.s32 %v604, %v610
    %vm613 = vc.u32 %v611, %v607
    %v614 = vsel %vm613, 1, 0
    %v615 = vadd.s32 %v611, %v607
    %v616 = vadd.s32 %v612, %v614
    %v617 = vadd.s32 %v616, %v606
    %v618 = vadd.s32 %v617, %v608
    %v619 = vand.u32 %v596, 65535
    %v620 = vshrl.u32 %v596, 16
    %v621 = vand.u32 %v591, 65535
    %v622 = vshrl.u32 %v591, 16
    %v623 = vmul.u32 %v619, %v621
    %v624 = vmul.u32 %v619, %v622
    %v625 = vmul.u32 %v620, %v621
    %v626 = vmul.u32 %v620, %v622
    %v627 = vshll.u32 %v624, 16
    %v628 = vshrl.u32 %v624, 16
    %v629 = vshll.u32 %v625, 16
    %v630 = vshrl.u32 %v625, 16
    %vm631 = vc.u32 %v623, %v627
    %v632 = vsel %vm631, 1, 0
    %v633 = vadd.s32 %v623, %v627
    %v634 = vadd.s32 %v626, %v632
    %vm635 = vc.u32 %v633, %v629
    %v636 = vsel %vm635, 1, 0
    %v637 = vadd.s32 %v633, %v629
    %v638 = vadd.s32 %v634, %v636
    %v639 = vadd.s32 %v638, %v628
    %v640 = vadd.s32 %v639, %v630
    %v641 = vmul.u32 %v596, %v587
    %v642 = vadd.s32 %v618, %v637
    %vm643 = vc.u32 %v618, %v637
    %v644 = vadd.s32 %v640, 1
    %v645 = vsel %vm643, %v644, %v640
    %v646 = vadd.s32 %v641, %v645
    %v647 = vadd.s32 %v646, 536870912
    %v648 = vshrl.u32 %v647, 30
    %v649 = vshll.u32 %v648, 30
    %v650 = vsub.s32 %v646, %v649
    %vm651 = vcmp.lt.s32.totalorder %v650, 0
    %v652 = vsub.s32 0, %v650
    %v653 = vsel %vm651, %v652, %v650
    %v654 = vclz %v653
    %v655 = vsub.s32 %v654, 2
    %vm656 = vcmp.gt.s32.totalorder 0, %v655
    %v657 = vsel %vm656, 0, %v655
    %v658 = vsub.s32 32, %v657
    %v659 = vshll.u32 %v650, %v657
    %v660 = vshrl.u32 %v642, %v658
    %v661 = vor.u32 %v659, %v660
    %v662 = vsub.s32 4294967266, %v657
    %v663 = vadd.s32 %v662, 127
    %v664 = vshll.u32 %v663, 23
    %v665 = vor.u32 4788187, %v664
    %v666 = vand.u32 2147483647, %v665
    %v668 = vcvt.s32.f32 %v661
    %v669 = vmul.f32 %v668, %v666
    %v670 = vxor.u32 %v669, 2147483648
    %v671 = vsel %vm550, %v670, %v669
    %v672 = vsub.s32 4, %v648
    %v673 = vsel %vm550, %v672, %v648
    %v674 = vsel %vm549, %v85, %v671
    %v675 = vsel %vm549, 0, %v673
    %v676 = vmul.f32 %v674, %v674
    %v677 = vmul.f32 %v676, -0.001358992
    %v678 = vadd.f32 %v677, 0.041655596
    %v679 = vmul.f32 %v676, %v678
    %v680 = vadd.f32 %v679, -0.4999988
    %v681 = vmul.f32 %v676, %v680
    %v682 = vadd.f32 1.0, %v681
    %v683 = vmul.f32 %v674, %v674
    %v684 = vmul.f32 %v683, -0.00019511016
    %v685 = vadd.f32 %v684, 0.008332121
    %v686 = vmul.f32 %v683, %v685
    %v687 = vadd.f32 %v686, -0.16666654
    %v688 = vmul.f32 %v683, %v687
    %v689 = vadd.f32 %v688, 1.0
    %v690 = vmul.f32 %v689, %v674
    %vm691 = vweird.f32 %v85
    %v692 = vand.u32 %v675, 3
    %vm693 = vcmp.lt.s32.totalorder %v692, 2
    %vm694 = vcmp.eq.s32.totalorder %v692, 0
    %v695 = vxor.u32 %v690, 2147483648
    %v696 = vsel %vm694, %v682, %v695
    %vm697 = vcmp.eq.s32.totalorder %v692, 2
    %v698 = vxor.u32 %v682, 2147483648
    %v699 = vsel %vm697, %v698, %v690
    %v700 = vsel %vm693, %v696, %v699
    %v701 = vsel %vm691, nan, %v700
    %v702 = vmul.f32 %v78, %v239
    %v703 = vmul.f32 %v79, %v393
    %v704 = vmul.f32 %v80, %v547
    %v705 = vmul.f32 %v81, %v701
    %v706 = vand.u32 2147483647, %v82
    %vm707 = vcmp.le.f32.partialorder %v706, 0.7853982
    %vm708 = vcmp.lt.s32.totalorder %v82, 0
    %v709 = vand.u32 %v82, 2139095040
    %v710 = vshrl.u32 %v709, 23
    %v711 = vsub.s32 %v710, 127
    %v712 = vand.u32 2147483647, %v82
    %v713 = vand.u32 %v712, 8388607
    %v714 = vor.u32 %v713, 8388608
    %v715 = vsub.s32 0, %v714
    %v716 = vadd.s32 %v711, 1
    %vm717 = vcmp.gt.s32.totalorder %v716, 0
    %v718 = vsel %vm717, %v716, 0
    %v719 = vshrl.u32 %v718, 5
    %v720 = vand.u32 %v718, 31
    %v721 = vsub.s32 32, %v720
    %v722 = vshrl.u32 683565275, %v721
    %v723 = vshll.u32 683565275, %v720
    %v724 = vshrl.u32 2475754826, %v721
    %v725 = vor.u32 %v723, %v724
    %v726 = vshll.u32 2475754826, %v720
    %v727 = vshrl.u32 2131351028, %v721
    %v728 = vor.u32 %v726, %v727
    %v729 = vshll.u32 2131351028, %v720
    %v730 = vshrl.u32 2102212464, %v721
    %v731 = vor.u32 %v729, %v730
    %v732 = vshll.u32 2102212464, %v720
    %v733 = vshrl.u32 920167782, %v721
    %v734 = vor.u32 %v732, %v733
    %v735 = vshll.u32 920167782, %v720
    %v736 = vshrl.u32 1326507024, %v721
    %v737 = vor.u32 %v735, %v736
    %vm738 = vcmp.lt.s32.totalorder %v719, 1
    %vm739 = vcmp.lt.s32.totalorder %v719, 2
    %vm740 = vcmp.lt.s32.totalorder %v719, 3
    %vm741 = vcmp.lt.s32.totalorder %v719, 4
    %v742 = vsel %vm738, %v722, %v725
    %v743 = vsel %vm741, %v731, 2102212464
    %v744 = vsel %vm740, %v728, %v743
    %v745 = vsel %vm739, %v742, %v744
    %v746 = vsel %vm738, %v725, %v728
    %v747 = vsel %vm741, %v734, 920167782
    %v748 = vsel %vm740, %v731, %v747
    %v749 = vsel %vm739, %v746, %v748
    %v750 = vsel %vm738, %v728, %v731
    %v751 = vsel %vm741, %v737, 1326507024
    %v752 = vsel %vm740, %v734, %v751
    %v753 = vsel %vm739, %v750, %v752
    %v754 = vshll.u32 %v714, 8
    %v755 = vand.u32 %v754, 65535
    %v756 = vshrl.u32 %v754, 16
    %v757 = vand.u32 %v753, 65535
    %v758 = vshrl.u32 %v753, 16
    %v759 = vmul.u32 %v755, %v757
    %v760 = vmul.u32 %v755, %v758
    %v761 = vmul.u32 %v756, %v757
    %v762 = vmul.u32 %v756, %v758
    %v763 = vshll.u32 %v760, 16
    %v764 = vshrl.u32 %v760, 16
    %v765 = vshll.u32 %v761, 16
    %v766 = vshrl.u32 %v761, 16
    %vm767 = vc.u32 %v759, %v763
    %v768 = vsel %vm767, 1, 0
    %v769 = vadd.s32 %v759, %v763
    %v770 = vadd.s32 %v762, %v768
    %vm771 = vc.u32 %v769, %v765
    %v772 = vsel %vm771, 1, 0
    %v773 = vadd.s32 %v769, %v765
    %v774 = vadd.s32 %v770, %v772
    %v775 = vadd.s32 %v774, %v764
    %v776 = vadd.s32 %v775, %v766
    %v777 = vand.u32 %v754, 65535
    %v778 = vshrl.u32 %v754, 16
    %v779 = vand.u32 %v749, 65535
    %v780 = vshrl.u32 %v749, 16
    %v781 = vmul.u32 %v777, %v779
    %v782 = vmul.u32 %v777, %v780
    %v783 = vmul.u32 %v778, %v779
    %v784 = vmul.u32 %v778, %v780
    %v785 = vshll.u32 %v782, 16
    %v786 = vshrl.u32 %v782, 16
    %v787 = vshll.u32 %v783, 16
    %v788 = vshrl.u32 %v783, 16
    %vm789 = vc.u32 %v781, %v785
    %v790 = vsel %vm789, 1, 0
    %v791 = vadd.s32 %v781, %v785
    %v792 = vadd.s32 %v784, %v790
    %vm793 = vc.u32 %v791, %v787
    %v794 = vsel %vm793, 1, 0
    %v795 = vadd.s32 %v791, %v787
    %v796 = vadd.s32 %v792, %v794
    %v797 = vadd.s32 %v796, %v786
    %v798 = vadd.s32 %v797, %v788
    %v799 = vmul.u32 %v754, %v745
    %v800 = vadd.s32 %v776, %v795
    %vm801 = vc.u32 %v776, %v795
    %v802 = vadd.s32 %v798, 1
    %v803 = vsel %vm801, %v802, %v798
    %v804 = vadd.s32 %v799, %v803
    %v805 = vadd.s32 %v804, 536870912
    %v806 = vshrl.u32 %v805, 30
    %v807 = vshll.u32 %v806, 30
    %v808 = vsub.s32 %v804, %v807
    %vm809 = vcmp.lt.s32.totalorder %v808, 0
    %v810 = vsub.s32 0, %v808
    %v811 = vsel %vm809, %v810, %v808
    %v812 = vclz %v811
    %v813 = vsub.s32 %v812, 2
    %vm814 = vcmp.gt.s32.totalorder 0, %v813
    %v815 = vsel %vm814, 0, %v813
    %v816 = vsub.s32 32, %v815
    %v817 = vshll.u32 %v808, %v815
    %v818 = vshrl.u32 %v800, %v816
    %v819 = vor.u32 %v817, %v818
    %v820 = vsub.s32 4294967266, %v815
    %v821 = vadd.s32 %v820, 127
    %v822 = vshll.u32 %v821, 23
    %v823 = vor.u32 4788187, %v822
    %v824 = vand.u32 2147483647, %v823
    %v826 = vcvt.s32.f32 %v819
    %v827 = vmul.f32 %v826, %v824
    %v828 = vxor.u32 %v827, 2147483648
    %v829 = vsel %vm708, %v828, %v827
    %v830 = vsub.s32 4, %v806
    %v831 = vsel %vm708, %v830, %v806
    %v832 = vsel %vm707, %v82, %v829
    %v833 = vsel %vm707, 0, %v831
    %v834 = vmul.f32 %v832, %v832
    %v835 = vmul.f32 %v834, -0.001358992
    %v836 = vadd.f32 %v835, 0.041655596
    %v837 = vmul.f32 %v834, %v836
    %v838 = vadd.f32 %v837, -0.4999988
    %v839 = vmul.f32 %v834, %v838
    %v840 = vadd.f32 1.0, %v839
    %v841 = vmul.f32 %v832, %v832
    %v842 = vmul.f32 %v841, -0.00019511016
    %v843 = vadd.f32 %v842, 0.008332121
    %v844 = vmul.f32 %v841, %v843
    %v845 = vadd.f32 %v844, -0.16666654
    %v846 = vmul.f32 %v841, %v845
    %v847 = vadd.f32 %v846, 1.0
    %v848 = vmul.f32 %v847, %v832
    %vm849 = vweird.f32 %v82
    %v850 = vadd.s32 %v833, 3
    %v851 = vand.u32 %v850, 3
    %vm852 = vcmp.lt.s32.totalorder %v851, 2
    %vm853 = vcmp.eq.s32.totalorder %v851, 0
    %v854 = vxor.u32 %v848, 2147483648
    %v855 = vsel %vm853, %v840, %v854
    %vm856 = vcmp.eq.s32.totalorder %v851, 2
    %v857 = vxor.u32 %v840, 2147483648
    %v858 = vsel %vm856, %v857, %v848
    %v859 = vsel %vm852, %v855, %v858
    %v860 = vsel %vm849, nan, %v859
    %v861 = vand.u32 2147483647, %v83
    %vm862 = vcmp.le.f32.partialorder %v861, 0.7853982
    %vm863 = vcmp.lt.s32.totalorder %v83, 0
    %v864 = vand.u32 %v83, 2139095040
    %v865 = vshrl.u32 %v864, 23
    %v866 = vsub.s32 %v865, 127
    %v867 = vand.u32 2147483647, %v83
    %v868 = vand.u32 %v867, 8388607
    %v869 = vor.u32 %v868, 8388608
    %v870 = vsub.s32 0, %v869
    %v871 = vadd.s32 %v866, 1
    %vm872 = vcmp.gt.s32.totalorder %v871, 0
    %v873 = vsel %vm872, %v871, 0
    %v874 = vshrl.u32 %v873, 5
    %v875 = vand.u32 %v873, 31
    %v876 = vsub.s32 32, %v875
    %v877 = vshrl.u32 683565275, %v876
    %v878 = vshll.u32 683565275, %v875
    %v879 = vshrl.u32 2475754826, %v876
    %v880 = vor.u32 %v878, %v879
    %v881 = vshll.u32 2475754826, %v875
    %v882 = vshrl.u32 2131351028, %v876
    %v883 = vor.u32 %v881, %v882
    %v884 = vshll.u32 2131351028, %v875
    %v885 = vshrl.u32 2102212464, %v876
    %v886 = vor.u32 %v884, %v885
    %v887 = vshll.u32 2102212464, %v875
    %v888 = vshrl.u32 920167782, %v876
    %v889 = vor.u32 %v887, %v888
    %v890 = vshll.u32 920167782, %v875
    %v891 = vshrl.u32 1326507024, %v876
    %v892 = vor.u32 %v890, %v891
    %vm893 = vcmp.lt.s32.totalorder %v874, 1
    %vm894 = vcmp.lt.s32.totalorder %v874, 2
    %vm895 = vcmp.lt.s32.totalorder %v874, 3
    %vm896 = vcmp.lt.s32.totalorder %v874, 4
    %v897 = vsel %vm893, %v877, %v880
    %v898 = vsel %vm896, %v886, 2102212464
    %v899 = vsel %vm895, %v883, %v898
    %v900 = vsel %vm894, %v897, %v899
    %v901 = vsel %vm893, %v880, %v883
    %v902 = vsel %vm896, %v889, 920167782
    %v903 = vsel %vm895, %v886, %v902
    %v904 = vsel %vm894, %v901, %v903
    %v905 = vsel %vm893, %v883, %v886
    %v906 = vsel %vm896, %v892, 1326507024
    %v907 = vsel %vm895, %v889, %v906
    %v908 = vsel %vm894, %v905, %v907
    %v909 = vshll.u32 %v869, 8
    %v910 = vand.u32 %v909, 65535
    %v911 = vshrl.u32 %v909, 16
    %v912 = vand.u32 %v908, 65535
    %v913 = vshrl.u32 %v908, 16
    %v914 = vmul.u32 %v910, %v912
    %v915 = vmul.u32 %v910, %v913
    %v916 = vmul.u32 %v911, %v912
    %v917 = vmul.u32 %v911, %v913
    %v918 = vshll.u32 %v915, 16
    %v919 = vshrl.u32 %v915, 16
    %v920 = vshll.u32 %v916, 16
    %v921 = vshrl.u32 %v916, 16
    %vm922 = vc.u32 %v914, %v918
    %v923 = vsel %vm922, 1, 0
    %v924 = vadd.s32 %v914, %v918
    %v925 = vadd.s32 %v917, %v923
    %vm926 = vc.u32 %v924, %v920
    %v927 = vsel %vm926, 1, 0
    %v928 = vadd.s32 %v924, %v920
    %v929 = vadd.s32 %v925, %v927
    %v930 = vadd.s32 %v929, %v919
    %v931 = vadd.s32 %v930, %v921
    %v932 = vand.u32 %v909, 65535
    %v933 = vshrl.u32 %v909, 16
    %v934 = vand.u32 %v904, 65535
    %v935 = vshrl.u32 %v904, 16
    %v936 = vmul.u32 %v932, %v934
    %v937 = vmul.u32 %v932, %v935
    %v938 = vmul.u32 %v933, %v934
    %v939 = vmul.u32 %v933, %v935
    %v940 = vshll.u32 %v937, 16
    %v941 = vshrl.u32 %v937, 16
    %v942 = vshll.u32 %v938, 16
    %v943 = vshrl.u32 %v938, 16
    %vm944 = vc.u32 %v936, %v940
    %v945 = vsel %vm944, 1, 0
    %v946 = vadd.s32 %v936, %v940
    %v947 = vadd.s32 %v939, %v945
    %vm948 = vc.u32 %v946, %v942
    %v949 = vsel %vm948, 1, 0
    %v950 = vadd.s32 %v946, %v942
    %v951 = vadd.s32 %v947, %v949
    %v952 = vadd.s32 %v951, %v941
    %v953 = vadd.s32 %v952, %v943
    %v954 = vmul.u32 %v909, %v900
    %v955 = vadd.s32 %v931, %v950
    %vm956 = vc.u32 %v931, %v950
    %v957 = vadd.s32 %v953, 1
    %v958 = vsel %vm956, %v957, %v953
    %v959 = vadd.s32 %v954, %v958
    %v960 = vadd.s32 %v959, 536870912
    %v961 = vshrl.u32 %v960, 30
    %v962 = vshll.u32 %v961, 30
    %v963 = vsub.s32 %v959, %v962
    %vm964 = vcmp.lt.s32.totalorder %v963, 0
    %v965 = vsub.s32 0, %v963
    %v966 = vsel %vm964, %v965, %v963
    %v967 = vclz %v966
    %v968 = vsub.s32 %v967, 2
    %vm969 = vcmp.gt.s32.totalorder 0, %v968
    %v970 = vsel %vm969, 0, %v968
    %v971 = vsub.s32 32, %v970
    %v972 = vshll.u32 %v963, %v970
    %v973 = vshrl.u32 %v955, %v971
    %v974 = vor.u32 %v972, %v973
    %v975 = vsub.s32 4294967266, %v970
    %v976 = vadd.s32 %v975, 127
    %v977 = vshll.u32 %v976, 23
    %v978 = vor.u32 4788187, %v977
    %v979 = vand.u32 2147483647, %v978
    %v981 = vcvt.s32.f32 %v974
    %v982 = vmul.f32 %v981, %v979
    %v983 = vxor.u32 %v982, 2147483648
    %v984 = vsel %vm863, %v983, %v982
    %v985 = vsub.s32 4, %v961
    %v986 = vsel %vm863, %v985, %v961
    %v987 = vsel %vm862, %v83, %v984
    %v988 = vsel %vm862, 0, %v986
    %v989 = vmul.f32 %v987, %v987
    %v990 = vmul.f32 %v989, -0.001358992
    %v991 = vadd.f32 %v990, 0.041655596
    %v992 = vmul.f32 %v989, %v991
    %v993 = vadd.f32 %v992, -0.4999988
    %v994 = vmul.f32 %v989, %v993
    %v995 = vadd.f32 1.0, %v994
    %v996 = vmul.f32 %v987, %v987
    %v997 = vmul.f32 %v996, -0.00019511016
    %v998 = vadd.f32 %v997, 0.008332121
    %v999 = vmul.f32 %v996, %v998
    %v1000 = vadd.f32 %v999, -0.16666654
    %v1001 = vmul.f32 %v996, %v1000
    %v1002 = vadd.f32 %v1001, 1.0
    %v1003 = vmul.f32 %v1002, %v987
    %vm1004 = vweird.f32 %v83
    %v1005 = vadd.s32 %v988, 3
    %v1006 = vand.u32 %v1005, 3
    %vm1007 = vcmp.lt.s32.totalorder %v1006, 2
    %vm1008 = vcmp.eq.s32.totalorder %v1006, 0
    %v1009 = vxor.u32 %v1003, 2147483648
    %v1010 = vsel %vm1008, %v995, %v1009
    %vm1011 = vcmp.eq.s32.totalorder %v1006, 2
    %v1012 = vxor.u32 %v995, 2147483648
    %v1013 = vsel %vm1011, %v1012, %v1003
    %v1014 = vsel %vm1007, %v1010, %v1013
    %v1015 = vsel %vm1004, nan, %v1014
    %v1016 = vand.u32 2147483647, %v84
    %vm1017 = vcmp.le.f32.partialorder %v1016, 0.7853982
    %vm1018 = vcmp.lt.s32.totalorder %v84, 0
    %v1019 = vand.u32 %v84, 2139095040
    %v1020 = vshrl.u32 %v1019, 23
    %v1021 = vsub.s32 %v1020, 127
    %v1022 = vand.u32 2147483647, %v84
    %v1023 = vand.u32 %v1022, 8388607
    %v1024 = vor.u32 %v1023, 8388608
    %v1025 = vsub.s32 0, %v1024
    %v1026 = vadd.s32 %v1021, 1
    %vm1027 = vcmp.gt.s32.totalorder %v1026, 0
    %v1028 = vsel %vm1027, %v1026, 0
    %v1029 = vshrl.u32 %v1028, 5
    %v1030 = vand.u32 %v1028, 31
    %v1031 = vsub.s32 32, %v1030
    %v1032 = vshrl.u32 683565275, %v1031
    %v1033 = vshll.u32 683565275, %v1030
    %v1034 = vshrl.u32 2475754826, %v1031
    %v1035 = vor.u32 %v1033, %v1034
    %v1036 = vshll.u32 2475754826, %v1030
    %v1037 = vshrl.u32 2131351028, %v1031
    %v1038 = vor.u32 %v1036, %v1037
    %v1039 = vshll.u32 2131351028, %v1030
    %v1040 = vshrl.u32 2102212464, %v1031
    %v1041 = vor.u32 %v1039, %v1040
    %v1042 = vshll.u32 2102212464, %v1030
    %v1043 = vshrl.u32 920167782, %v1031
    %v1044 = vor.u32 %v1042, %v1043
    %v1045 = vshll.u32 920167782, %v1030
    %v1046 = vshrl.u32 1326507024, %v1031
    %v1047 = vor.u32 %v1045, %v1046
    %vm1048 = vcmp.lt.s32.totalorder %v1029, 1
    %vm1049 = vcmp.lt.s32.totalorder %v1029, 2
    %vm1050 = vcmp.lt.s32.totalorder %v1029, 3
    %vm1051 = vcmp.lt.s32.totalorder %v1029, 4
    %v1052 = vsel %vm1048, %v1032, %v1035
    %v1053 = vsel %vm1051, %v1041, 2102212464
    %v1054 = vsel %vm1050, %v1038, %v1053
    %v1055 = vsel %vm1049, %v1052, %v1054
    %v1056 = vsel %vm1048, %v1035, %v1038
    %v1057 = vsel %vm1051, %v1044, 920167782
    %v1058 = vsel %vm1050, %v1041, %v1057
    %v1059 = vsel %vm1049, %v1056, %v1058
    %v1060 = vsel %vm1048, %v1038, %v1041
    %v1061 = vsel %vm1051, %v1047, 1326507024
    %v1062 = vsel %vm1050, %v1044, %v1061
    %v1063 = vsel %vm1049, %v1060, %v1062
    %v1064 = vshll.u32 %v1024, 8
    %v1065 = vand.u32 %v1064, 65535
    %v1066 = vshrl.u32 %v1064, 16
    %v1067 = vand.u32 %v1063, 65535
    %v1068 = vshrl.u32 %v1063, 16
    %v1069 = vmul.u32 %v1065, %v1067
    %v1070 = vmul.u32 %v1065, %v1068
    %v1071 = vmul.u32 %v1066, %v1067
    %v1072 = vmul.u32 %v1066, %v1068
    %v1073 = vshll.u32 %v1070, 16
    %v1074 = vshrl.u32 %v1070, 16
    %v1075 = vshll.u32 %v1071, 16
    %v1076 = vshrl.u32 %v1071, 16
    %vm1077 = vc.u32 %v1069, %v1073
    %v1078 = vsel %vm1077, 1, 0
    %v1079 = vadd.s32 %v1069, %v1073
    %v1080 = vadd.s32 %v1072, %v1078
    %vm1081 = vc.u32 %v1079, %v1075
    %v1082 = vsel %vm1081, 1, 0
    %v1083 = vadd.s32 %v1079, %v1075
    %v1084 = vadd.s32 %v1080, %v1082
    %v1085 = vadd.s32 %v1084, %v1074
    %v1086 = vadd.s32 %v1085, %v1076
    %v1087 = vand.u32 %v1064, 65535
    %v1088 = vshrl.u32 %v1064, 16
    %v1089 = vand.u32 %v1059, 65535
    %v1090 = vshrl.u32 %v1059, 16
    %v1091 = vmul.u32 %v1087, %v1089
    %v1092 = vmul.u32 %v1087, %v1090
    %v1093 = vmul.u32 %v1088, %v1089
    %v1094 = vmul.u32 %v1088, %v1090
    %v1095 = vshll.u32 %v1092, 16
    %v1096 = vshrl.u32 %v1092, 16
    %v1097 = vshll.u32 %v1093, 16
    %v1098 = vshrl.u32 %v1093, 16
    %vm1099 = vc.u32 %v1091, %v1095
    %v1100 = vsel %vm1099, 1, 0
    %v1101 = vadd.s32 %v1091, %v1095
    %v1102 = vadd.s32 %v1094, %v1100
    %vm1103 = vc.u32 %v1101, %v1097
    %v1104 = vsel %vm1103, 1, 0
    %v1105 = vadd.s32 %v1101, %v1097
    %v1106 = vadd.s32 %v1102, %v1104
    %v1107 = vadd.s32 %v1106, %v1096
    %v1108 = vadd.s32 %v1107, %v1098
    %v1109 = vmul.u32 %v1064, %v1055
    %v1110 = vadd.s32 %v1086, %v1105
    %vm1111 = vc.u32 %v1086, %v1105
    %v1112 = vadd.s32 %v1108, 1
    %v1113 = vsel %vm1111, %v1112, %v1108
    %v1114 = vadd.s32 %v1109, %v1113
    %v1115 = vadd.s32 %v1114, 536870912
    %v1116 = vshrl.u32 %v1115, 30
    %v1117 = vshll.u32 %v1116, 30
    %v1118 = vsub.s32 %v1114, %v1117
    %vm1119 = vcmp.lt.s32.totalorder %v1118, 0
    %v1120 = vsub.s32 0, %v1118
    %v1121 = vsel %vm1119, %v1120, %v1118
    %v1122 = vclz %v1121
    %v1123 = vsub.s32 %v1122, 2
    %vm1124 = vcmp.gt.s32.totalorder 0, %v1123
    %v1125 = vsel %vm1124, 0, %v1123
    %v1126 = vsub.s32 32, %v1125
    %v1127 = vshll.u32 %v1118, %v1125
    %v1128 = vshrl.u32 %v1110, %v1126
    %v1129 = vor.u32 %v1127, %v1128
    %v1130 = vsub.s32 4294967266, %v1125
    %v1131 = vadd.s32 %v1130, 127
    %v1132 = vshll.u32 %v1131, 23
    %v1133 = vor.u32 4788187, %v1132
    %v1134 = vand.u32 2147483647, %v1133
    %v1136 = vcvt.s32.f32 %v1129
    %v1137 = vmul.f32 %v1136, %v1134
    %v1138 = vxor.u32 %v1137, 2147483648
    %v1139 = vsel %vm1018, %v1138, %v1137
    %v1140 = vsub.s32 4, %v1116
    %v1141 = vsel %vm1018, %v1140, %v1116
    %v1142 = vsel %vm1017, %v84, %v1139
    %v1143 = vsel %vm1017, 0, %v1141
    %v1144 = vmul.f32 %v1142, %v1142
    %v1145 = vmul.f32 %v1144, -0.001358992
    %v1146 = vadd.f32 %v1145, 0.041655596
    %v1147 = vmul.f32 %v1144, %v1146
    %v1148 = vadd.f32 %v1147, -0.4999988
    %v1149 = vmul.f32 %v1144, %v1148
    %v1150 = vadd.f32 1.0, %v1149
    %v1151 = vmul.f32 %v1142, %v1142
    %v1152 = vmul.f32 %v1151, -0.00019511016
    %v1153 = vadd.f32 %v1152, 0.008332121
    %v1154 = vmul.f32 %v1151, %v1153
    %v1155 = vadd.f32 %v1154, -0.16666654
    %v1156 = vmul.f32 %v1151, %v1155
    %v1157 = vadd.f32 %v1156, 1.0
    %v1158 = vmul.f32 %v1157, %v1142
    %vm1159 = vweird.f32 %v84
    %v1160 = vadd.s32 %v1143, 3
    %v1161 = vand.u32 %v1160, 3
    %vm1162 = vcmp.lt.s32.totalorder %v1161, 2
    %vm1163 = vcmp.eq.s32.totalorder %v1161, 0
    %v1164 = vxor.u32 %v1158, 2147483648
    %v1165 = vsel %vm1163, %v1150, %v1164
    %vm1166 = vcmp.eq.s32.totalorder %v1161, 2
    %v1167 = vxor.u32 %v1150, 2147483648
    %v1168 = vsel %vm1166, %v1167, %v1158
    %v1169 = vsel %vm1162, %v1165, %v1168
    %v1170 = vsel %vm1159, nan, %v1169
    %v1171 = vand.u32 2147483647, %v85
    %vm1172 = vcmp.le.f32.partialorder %v1171, 0.7853982
    %vm1173 = vcmp.lt.s32.totalorder %v85, 0
    %v1174 = vand.u32 %v85, 2139095040
    %v1175 = vshrl.u32 %v1174, 23
    %v1176 = vsub.s32 %v1175, 127
    %v1177 = vand.u32 2147483647, %v85
    %v1178 = vand.u32 %v1177, 8388607
    %v1179 = vor.u32 %v1178, 8388608
    %v1180 = vsub.s32 0, %v1179
    %v1181 = vadd.s32 %v1176, 1
    %vm1182 = vcmp.gt.s32.totalorder %v1181, 0
    %v1183 = vsel %vm1182, %v1181, 0
    %v1184 = vshrl.u32 %v1183, 5
    %v1185 = vand.u32 %v1183, 31
    %v1186 = vsub.s32 32, %v1185
    %v1187 = vshrl.u32 683565275, %v1186
    %v1188 = vshll.u32 683565275, %v1185
    %v1189 = vshrl.u32 2475754826, %v1186
    %v1190 = vor.u32 %v1188, %v1189
    %v1191 = vshll.u32 2475754826, %v1185
    %v1192 = vshrl.u32 2131351028, %v1186
    %v1193 = vor.u32 %v1191, %v1192
    %v1194 = vshll.u32 2131351028, %v1185
    %v1195 = vshrl.u32 2102212464, %v1186
    %v1196 = vor.u32 %v1194, %v1195
    %v1197 = vshll.u32 2102212464, %v1185
    %v1198 = vshrl.u32 920167782, %v1186
    %v1199 = vor.u32 %v1197, %v1198
    %v1200 = vshll.u32 920167782, %v1185
    %v1201 = vshrl.u32 1326507024, %v1186
    %v1202 = vor.u32 %v1200, %v1201
    %vm1203 = vcmp.lt.s32.totalorder %v1184, 1
    %vm1204 = vcmp.lt.s32.totalorder %v1184, 2
    %vm1205 = vcmp.lt.s32.totalorder %v1184, 3
    %vm1206 = vcmp.lt.s32.totalorder %v1184, 4
    %v1207 = vsel %vm1203, %v1187, %v1190
    %v1208 = vsel %vm1206, %v1196, 2102212464
    %v1209 = vsel %vm1205, %v1193, %v1208
    %v1210 = vsel %vm1204, %v1207, %v1209
    %v1211 = vsel %vm1203, %v1190, %v1193
    %v1212 = vsel %vm1206, %v1199, 920167782
    %v1213 = vsel %vm1205, %v1196, %v1212
    %v1214 = vsel %vm1204, %v1211, %v1213
    %v1215 = vsel %vm1203, %v1193, %v1196
    %v1216 = vsel %vm1206, %v1202, 1326507024
    %v1217 = vsel %vm1205, %v1199, %v1216
    %v1218 = vsel %vm1204, %v1215, %v1217
    %v1219 = vshll.u32 %v1179, 8
    %v1220 = vand.u32 %v1219, 65535
    %v1221 = vshrl.u32 %v1219, 16
    %v1222 = vand.u32 %v1218, 65535
    %v1223 = vshrl.u32 %v1218, 16
    %v1224 = vmul.u32 %v1220, %v1222
    %v1225 = vmul.u32 %v1220, %v1223
    %v1226 = vmul.u32 %v1221, %v1222
    %v1227 = vmul.u32 %v1221, %v1223
    %v1228 = vshll.u32 %v1225, 16
    %v1229 = vshrl.u32 %v1225, 16
    %v1230 = vshll.u32 %v1226, 16
    %v1231 = vshrl.u32 %v1226, 16
    %vm1232 = vc.u32 %v1224, %v1228
    %v1233 = vsel %vm1232, 1, 0
    %v1234 = vadd.s32 %v1224, %v1228
    %v1235 = vadd.s32 %v1227, %v1233
    %vm1236 = vc.u32 %v1234, %v1230
    %v1237 = vsel %vm1236, 1, 0
    %v1238 = vadd.s32 %v1234, %v1230
    %v1239 = vadd.s32 %v1235, %v1237
    %v1240 = vadd.s32 %v1239, %v1229
    %v1241 = vadd.s32 %v1240, %v1231
    %v1242 = vand.u32 %v1219, 65535
    %v1243 = vshrl.u32 %v1219, 16
    %v1244 = vand.u32 %v1214, 65535
    %v1245 = vshrl.u32 %v1214, 16
    %v1246 = vmul.u32 %v1242, %v1244
    %v1247 = vmul.u32 %v1242, %v1245
    %v1248 = vmul.u32 %v1243, %v1244
    %v1249 = vmul.u32 %v1243, %v1245
    %v1250 = vshll.u32 %v1247, 16
    %v1251 = vshrl.u32 %v1247, 16
    %v1252 = vshll.u32 %v1248, 16
    %v1253 = vshrl.u32 %v1248, 16
    %vm1254 = vc.u32 %v1246, %v1250
    %v1255 = vsel %vm1254, 1, 0
    %v1256 = vadd.s32 %v1246, %v1250
    %v1257 = vadd.s32 %v1249, %v1255
    %vm1258 = vc.u32 %v1256, %v1252
    %v1259 = vsel %vm1258, 1, 0
    %v1260 = vadd.s32 %v1256, %v1252
    %v1261 = vadd.s32 %v1257, %v1259
    %v1262 = vadd.s32 %v1261, %v1251
    %v1263 = vadd.s32 %v1262, %v1253
    %v1264 = vmul.u32 %v1219, %v1210
    %v1265 = vadd.s32 %v1241, %v1260
    %vm1266 = vc.u32 %v1241, %v1260
    %v1267 = vadd.s32 %v1263, 1
    %v1268 = vsel %vm1266, %v1267, %v1263
    %v1269 = vadd.s32 %v1264, %v1268
    %v1270 = vadd.s32 %v1269, 536870912
    %v1271 = vshrl.u32 %v1270, 30
    %v1272 = vshll.u32 %v1271, 30
    %v1273 = vsub.s32 %v1269, %v1272
    %vm1274 = vcmp.lt.s32.totalorder %v1273, 0
    %v1275 = vsub.s32 0, %v1273
    %v1276 = vsel %vm1274, %v1275, %v1273
    %v1277 = vclz %v1276
    %v1278 = vsub.s32 %v1277, 2
    %vm1279 = vcmp.gt.s32.totalorder 0, %v1278
    %v1280 = vsel %vm1279, 0, %v1278
    %v1281 = vsub.s32 32, %v1280
    %v1282 = vshll.u32 %v1273, %v1280
    %v1283 = vshrl.u32 %v1265, %v1281
    %v1284 = vor.u32 %v1282, %v1283
    %v1285 = vsub.s32 4294967266, %v1280
    %v1286 = vadd.s32 %v1285, 127
    %v1287 = vshll.u32 %v1286, 23
    %v1288 = vor.u32 4788187, %v1287
    %v1289 = vand.u32 2147483647, %v1288
    %v1291 = vcvt.s32.f32 %v1284
    %v1292 = vmul.f32 %v1291, %v1289
    %v1293 = vxor.u32 %v1292, 2147483648
    %v1294 = vsel %vm1173, %v1293, %v1292
    %v1295 = vsub.s32 4, %v1271
    %v1296 = vsel %vm1173, %v1295, %v1271
    %v1297 = vsel %vm1172, %v85, %v1294
    %v1298 = vsel %vm1172, 0, %v1296
    %v1299 = vmul.f32 %v1297, %v1297
    %v1300 = vmul.f32 %v1299, -0.001358992
    %v1301 = vadd.f32 %v1300, 0.041655596
    %v1302 = vmul.f32 %v1299, %v1301
    %v1303 = vadd.f32 %v1302, -0.4999988
    %v1304 = vmul.f32 %v1299, %v1303
    %v1305 = vadd.f32 1.0, %v1304
    %v1306 = vmul.f32 %v1297, %v1297
    %v1307 = vmul.f32 %v1306, -0.00019511016
    %v1308 = vadd.f32 %v1307, 0.008332121
    %v1309 = vmul.f32 %v1306, %v1308
    %v1310 = vadd.f32 %v1309, -0.16666654
    %v1311 = vmul.f32 %v1306, %v1310
    %v1312 = vadd.f32 %v1311, 1.0
    %v1313 = vmul.f32 %v1312, %v1297
    %vm1314 = vweird.f32 %v85
    %v1315 = vadd.s32 %v1298, 3
    %v1316 = vand.u32 %v1315, 3
    %vm1317 = vcmp.lt.s32.totalorder %v1316, 2
    %vm1318 = vcmp.eq.s32.totalorder %v1316, 0
    %v1319 = vxor.u32 %v1313, 2147483648
    %v1320 = vsel %vm1318, %v1305, %v1319
    %vm1321 = vcmp.eq.s32.totalorder %v1316, 2
    %v1322 = vxor.u32 %v1305, 2147483648
    %v1323 = vsel %vm1321, %v1322, %v1313
    %v1324 = vsel %vm1317, %v1320, %v1323
    %v1325 = vsel %vm1314, nan, %v1324
    %v1326 = vmul.f32 %v78, %v860
    %v1327 = vmul.f32 %v79, %v1015
    %v1328 = vmul.f32 %v80, %v1170
    %v1329 = vmul.f32 %v81, %v1325
    %v1330 = vpack.c.bf16 %v704, %v702
    %v1331 = vpack.c.bf16 %v1328, %v1326
    %v1332 = vld [vmem:[#allocation6] sm:$0xff]
    %v1333 = vld [vmem:[#allocation6 + $0x8] sm:$0xff]
    %v1334 = vld [vmem:[#allocation6 + $0x10] sm:$0xff]
    %v1335 = vld [vmem:[#allocation6 + $0x18] sm:$0xff]
    %v1336 = vld [vmem:[#allocation6 + $0x20] sm:$0xff]
    %v1337 = vld [vmem:[#allocation6 + $0x28] sm:$0xff]
    %v1338 = vld [vmem:[#allocation6 + $0x30] sm:$0xff]
    %v1339 = vld [vmem:[#allocation6 + $0x38] sm:$0xff]
    %v1340 = vld [vmem:[#allocation6 + $0x40] sm:$0xff]
    %v1341 = vld [vmem:[#allocation6 + $0x48] sm:$0xff]
    %v1342 = vld [vmem:[#allocation6 + $0x50] sm:$0xff]
    %v1343 = vld [vmem:[#allocation6 + $0x58] sm:$0xff]
    %v1344 = vld [vmem:[#allocation6 + $0x60] sm:$0xff]
    %v1345 = vld [vmem:[#allocation6 + $0x68] sm:$0xff]
    %v1346 = vld [vmem:[#allocation6 + $0x70] sm:$0xff]
    %v1347 = vld [vmem:[#allocation6 + $0x78] sm:$0xff]
    %v1348 = vld [vmem:[#allocation6 + $0x80] sm:$0xff]
    %v1349 = vld [vmem:[#allocation6 + $0x88] sm:$0xff]
    %v1350 = vld [vmem:[#allocation6 + $0x90] sm:$0xff]
    %v1351 = vld [vmem:[#allocation6 + $0x98] sm:$0xff]
    %v1352 = vld [vmem:[#allocation6 + $0xa0] sm:$0xff]
    %v1353 = vld [vmem:[#allocation6 + $0xa8] sm:$0xff]
    %v1354 = vld [vmem:[#allocation6 + $0xb0] sm:$0xff]
    %v1355 = vld [vmem:[#allocation6 + $0xb8] sm:$0xff]
    %v1356 = vld [vmem:[#allocation6 + $0xc0] sm:$0xff]
    %v1357 = vld [vmem:[#allocation6 + $0xc8] sm:$0xff]
    %v1358 = vld [vmem:[#allocation6 + $0xd0] sm:$0xff]
    %v1359 = vld [vmem:[#allocation6 + $0xd8] sm:$0xff]
    %v1360 = vld [vmem:[#allocation6 + $0xe0] sm:$0xff]
    %v1361 = vld [vmem:[#allocation6 + $0xe8] sm:$0xff]
    %v1362 = vld [vmem:[#allocation6 + $0xf0] sm:$0xff]
    %v1363 = vld [vmem:[#allocation6 + $0xf8] sm:$0xff]
    %v1364 = vld [vmem:[#allocation7] ss:$2 sm:$0x3]
    %1366 = vset.pattern.permute.xlu0 0
    %1367 = vperm.xlu0 %1366, %v703
    %v1368 = vpop.permute.xlu0 %1367
    %1371 = vset.pattern.permute.xlu0 0
    %1372 = vperm.xlu0 %1371, %v705
    %v1373 = vpop.permute.xlu0 %1372
    %v1376 = vperm.slane %v1364, 0
    %v1377 = vperm.slane %v1364, 1
    %v1380 = vmul.f32 %v1368, %v1376
    %v1381 = vmul.f32 %v1368, %v1377
    %v1382 = vmul.f32 %v1373, %v1376
    %v1383 = vmul.f32 %v1373, %v1377
    %v1416 = vunpack.c.l.b16 %v1332
    %v1417 = vunpack.c.h.b16 %v1332
    %v1418 = vunpack.c.l.b16 %v1333
    %v1419 = vunpack.c.h.b16 %v1333
    %v1420 = vunpack.c.l.b16 %v1334
    %v1421 = vunpack.c.h.b16 %v1334
    %v1422 = vunpack.c.l.b16 %v1335
    %v1423 = vunpack.c.h.b16 %v1335
    %v1424 = vunpack.c.l.b16 %v1336
    %v1425 = vunpack.c.h.b16 %v1336
    %v1426 = vunpack.c.l.b16 %v1337
    %v1427 = vunpack.c.h.b16 %v1337
    %v1428 = vunpack.c.l.b16 %v1338
    %v1429 = vunpack.c.h.b16 %v1338
    %v1430 = vunpack.c.l.b16 %v1339
    %v1431 = vunpack.c.h.b16 %v1339
    %v1432 = vunpack.c.l.b16 %v1340
    %v1433 = vunpack.c.h.b16 %v1340
    %v1434 = vunpack.c.l.b16 %v1341
    %v1435 = vunpack.c.h.b16 %v1341
    %v1436 = vunpack.c.l.b16 %v1342
    %v1437 = vunpack.c.h.b16 %v1342
    %v1438 = vunpack.c.l.b16 %v1343
    %v1439 = vunpack.c.h.b16 %v1343
    %v1440 = vunpack.c.l.b16 %v1344
    %v1441 = vunpack.c.h.b16 %v1344
    %v1442 = vunpack.c.l.b16 %v1345
    %v1443 = vunpack.c.h.b16 %v1345
    %v1444 = vunpack.c.l.b16 %v1346
    %v1445 = vunpack.c.h.b16 %v1346
    %v1446 = vunpack.c.l.b16 %v1347
    %v1447 = vunpack.c.h.b16 %v1347
    %v1448 = vunpack.c.l.b16 %v1348
    %v1449 = vunpack.c.h.b16 %v1348
    %v1450 = vunpack.c.l.b16 %v1349
    %v1451 = vunpack.c.h.b16 %v1349
    %v1452 = vunpack.c.l.b16 %v1350
    %v1453 = vunpack.c.h.b16 %v1350
    %v1454 = vunpack.c.l.b16 %v1351
    %v1455 = vunpack.c.h.b16 %v1351
    %v1456 = vunpack.c.l.b16 %v1352
    %v1457 = vunpack.c.h.b16 %v1352
    %v1458 = vunpack.c.l.b16 %v1353
    %v1459 = vunpack.c.h.b16 %v1353
    %v1460 = vunpack.c.l.b16 %v1354
    %v1461 = vunpack.c.h.b16 %v1354
    %v1462 = vunpack.c.l.b16 %v1355
    %v1463 = vunpack.c.h.b16 %v1355
    %v1464 = vunpack.c.l.b16 %v1356
    %v1465 = vunpack.c.h.b16 %v1356
    %v1466 = vunpack.c.l.b16 %v1357
    %v1467 = vunpack.c.h.b16 %v1357
    %v1468 = vunpack.c.l.b16 %v1358
    %v1469 = vunpack.c.h.b16 %v1358
    %v1470 = vunpack.c.l.b16 %v1359
    %v1471 = vunpack.c.h.b16 %v1359
    %v1472 = vunpack.c.l.b16 %v1360
    %v1473 = vunpack.c.h.b16 %v1360
    %v1474 = vunpack.c.l.b16 %v1361
    %v1475 = vunpack.c.h.b16 %v1361
    %v1476 = vunpack.c.l.b16 %v1362
    %v1477 = vunpack.c.h.b16 %v1362
    %v1478 = vunpack.c.l.b16 %v1363
    %v1479 = vunpack.c.h.b16 %v1363
    %v1480 = vpack.c.b16 %v1418, %v1416
    %v1481 = vpack.c.b16 %v1419, %v1417
    %v1482 = vpack.c.b16 %v1422, %v1420
    %v1483 = vpack.c.b16 %v1423, %v1421
    %v1484 = vpack.c.b16 %v1426, %v1424
    %v1485 = vpack.c.b16 %v1427, %v1425
    %v1486 = vpack.c.b16 %v1430, %v1428
    %v1487 = vpack.c.b16 %v1431, %v1429
    %v1488 = vpack.c.b16 %v1434, %v1432
    %v1489 = vpack.c.b16 %v1435, %v1433
    %v1490 = vpack.c.b16 %v1438, %v1436
    %v1491 = vpack.c.b16 %v1439, %v1437
    %v1492 = vpack.c.b16 %v1442, %v1440
    %v1493 = vpack.c.b16 %v1443, %v1441
    %v1494 = vpack.c.b16 %v1446, %v1444
    %v1495 = vpack.c.b16 %v1447, %v1445
    %v1496 = vpack.c.b16 %v1450, %v1448
    %v1497 = vpack.c.b16 %v1451, %v1449
    %v1498 = vpack.c.b16 %v1454, %v1452
    %v1499 = vpack.c.b16 %v1455, %v1453
    %v1500 = vpack.c.b16 %v1458, %v1456
    %v1501 = vpack.c.b16 %v1459, %v1457
    %v1502 = vpack.c.b16 %v1462, %v1460
    %v1503 = vpack.c.b16 %v1463, %v1461
    %v1504 = vpack.c.b16 %v1466, %v1464
    %v1505 = vpack.c.b16 %v1467, %v1465
    %v1506 = vpack.c.b16 %v1470, %v1468
    %v1507 = vpack.c.b16 %v1471, %v1469
    %v1508 = vpack.c.b16 %v1474, %v1472
    %v1509 = vpack.c.b16 %v1475, %v1473
    %v1510 = vpack.c.b16 %v1478, %v1476
    %v1511 = vpack.c.b16 %v1479, %v1477
    %1544 = vmatpush.bf16.msra.mxu0 %v1494
    %1545 = vmatpush.bf16.msra.mxu0 %v1492
    %1546 = vmatpush.bf16.msra.mxu0 %v1490
    %1547 = vmatpush.bf16.msra.mxu0 %v1488
    %1548 = vmatpush.bf16.msra.mxu0 %v1486
    %1549 = vmatpush.bf16.msra.mxu0 %v1484
    %1550 = vmatpush.bf16.msra.mxu0 %v1482
    %1551 = vmatpush.bf16.msra.mxu0 %v1480
    %1552 = vmatmul.bf16.gmra.mxu0 %v1330
    %v1553 = vpop.f32.mrf.mxu0
    %v1554 = vadd.f32 %v1380, %v1553
    %v1555 = vpop.f32.mrf.mxu0
    %v1556 = vadd.f32 %v1382, %v1555
    %1557 = vdwg.mxu0
    %1558 = vmatpush.bf16.msra.mxu0 %v1510
    %1559 = vmatpush.bf16.msra.mxu0 %v1508
    %1560 = vmatpush.bf16.msra.mxu0 %v1506
    %1561 = vmatpush.bf16.msra.mxu0 %v1504
    %1562 = vmatpush.bf16.msra.mxu0 %v1502
    %1563 = vmatpush.bf16.msra.mxu0 %v1500
    %1564 = vmatpush.bf16.msra.mxu0 %v1498
    %1565 = vmatpush.bf16.msra.mxu0 %v1496
    %1566 = vmatmul.bf16.gmra.mxu0 %v1331
    %v1567 = vpop.f32.mrf.mxu0
    %v1568 = vadd.f32 %v1554, %v1567
    %v1569 = vpop.f32.mrf.mxu0
    %v1570 = vadd.f32 %v1556, %v1569
    %1571 = vdwg.mxu0
    %1572 = vmatpush.bf16.msra.mxu0 %v1495
    %1573 = vmatpush.bf16.msra.mxu0 %v1493
    %1574 = vmatpush.bf16.msra.mxu0 %v1491
    %1575 = vmatpush.bf16.msra.mxu0 %v1489
    %1576 = vmatpush.bf16.msra.mxu0 %v1487
    %1577 = vmatpush.bf16.msra.mxu0 %v1485
    %1578 = vmatpush.bf16.msra.mxu0 %v1483
    %1579 = vmatpush.bf16.msra.mxu0 %v1481
    %1580 = vmatmul.bf16.gmra.mxu0 %v1330
    %v1581 = vpop.f32.mrf.mxu0
    %v1582 = vadd.f32 %v1381, %v1581
    %v1583 = vpop.f32.mrf.mxu0
    %v1584 = vadd.f32 %v1383, %v1583
    %1585 = vdwg.mxu0
    %1586 = vmatpush.bf16.msra.mxu0 %v1511
    %1587 = vmatpush.bf16.msra.mxu0 %v1509
    %1588 = vmatpush.bf16.msra.mxu0 %v1507
    %1589 = vmatpush.bf16.msra.mxu0 %v1505
    %1590 = vmatpush.bf16.msra.mxu0 %v1503
    %1591 = vmatpush.bf16.msra.mxu0 %v1501
    %1592 = vmatpush.bf16.msra.mxu0 %v1499
    %1593 = vmatpush.bf16.msra.mxu0 %v1497
    %1594 = vmatmul.bf16.gmra.mxu0 %v1331
    %v1595 = vpop.f32.mrf.mxu0
    %v1596 = vadd.f32 %v1582, %v1595
    %v1597 = vpop.f32.mrf.mxu0
    %v1598 = vadd.f32 %v1584, %v1597
    %1599 = vdwg.mxu0
    %s1600 = scalar_lea.vmem [#allocation7], 1
    %v1601 = vld [vmem:[%s1600] ss:$2 sm:$0x3]
    %1603 = vset.pattern.permute.xlu0 0
    %1604 = vperm.xlu0 %1603, %v1327
    %v1605 = vpop.permute.xlu0 %1604
    %1608 = vset.pattern.permute.xlu0 0
    %1609 = vperm.xlu0 %1608, %v1329
    %v1610 = vpop.permute.xlu0 %1609
    %v1613 = vperm.slane %v1601, 0
    %v1614 = vperm.slane %v1601, 1
    %v1617 = vmul.f32 %v1605, %v1613
    %v1618 = vmul.f32 %v1605, %v1614
    %v1619 = vmul.f32 %v1610, %v1613
    %v1620 = vmul.f32 %v1610, %v1614
    %v1621 = vadd.f32 %v1568, %v1617
    %v1622 = vadd.f32 %v1596, %v1618
    %v1623 = vadd.f32 %v1570, %v1619
    %v1624 = vadd.f32 %v1598, %v1620
    %v1627 = vrot.slane %v1622, 7
    %v1628 = vrot.slane %v1624, 7
    %v1631 = vadd.f32 %v1621, %v1627
    %v1632 = vadd.f32 %v1623, %v1628
    %1633 = vst [vmem:[%s4 - $0x1] sm:$0xfe] %v1631
    %1634 = vst [vmem:[%s4 + $0x7] sm:$0xfe] %v1632
    // Predicated region
    $region34: #{tpu_custom_call.1} parent=1 // pred_check
      _
    $region35: #{tpu_custom_call.1} parent=1 // pred_check_branch
      %1636 = sbr.rel (0) target = $region37
    $region36: #{tpu_custom_call.1} parent=1 // pred_region
      _
    $region37: #{tpu_custom_call.1} parent=1 // pred_fallthru
      _
    // Predicated region
    $region38: #{tpu_custom_call.1} parent=1 // pred_check
      _
    $region39: #{tpu_custom_call.1} parent=1 // pred_check_branch
      %1638 = sbr.rel (0) target = $region41
    $region40: #{tpu_custom_call.1} parent=1 // pred_region
      _
    $region41: #{tpu_custom_call.1} parent=1 // pred_fallthru
      _
    %1639 = vsyncpa [#allocation3], 1
    %1640 = vsyncpa [#allocation5], 1
    %1641 = vsyncpa [#allocation8], 1

</llo_original>
